<compile_context>
chip_gen: v7x
topology: tpu7x:2x2x1
jax: 0.10.0
libtpu: 0.0.40
codegen_flags: <defaults>
</compile_context>

<pallas_src>
import jax
import jax.numpy as jnp
from jax import lax
from jax.experimental import pallas as pl
from jax.experimental.pallas import tpu as pltpu

LANE = 128      # vreg lane width  (last dim)
SUBLANE = 8     # vreg sublane count (second-to-last dim)


def _round_up(v, m):
    return (v + m - 1) // m * m


# ---------------------------------------------------------------------------
# Fused forward kernel: grid = (num_edge_tiles,)  [reduction axis, "arbitrary"]
# ---------------------------------------------------------------------------
def _fused_forward_kernel(x_ref, ea_ref, we_ref, src_ref, dst_ref, ew_ref,
                          batch_ref, wn_ref, bn_ref, w1_ref, b1_ref,
                          w2_ref, b2_ref, z_ref, ne_ref, agg_ref):
    et = pl.program_id(0)
    n_pad = x_ref.shape[0]
    te = ea_ref.shape[0]
    b_pad = z_ref.shape[0]

    # --- init: node accumulator starts as the raw node features (residual) ---
    @pl.when(et == 0)
    def _():
        agg_ref[...] = x_ref[...]

    # --- edge-conditioned messages for this edge tile (bf16 MXU, f32 acc) ----
    edge_feat = jnp.dot(ea_ref[...].astype(jnp.bfloat16), we_ref[...],
                        preferred_element_type=jnp.float32)             # [te, F]
    # gather x[src] as a tile-local one-hot matmul (padded src == -1 -> zero row)
    gather = (src_ref[...] ==
              lax.broadcasted_iota(jnp.int32, (te, n_pad), 1)
              ).astype(jnp.bfloat16)                                    # [te, N]
    x_src = jnp.dot(gather, x_ref[...].astype(jnp.bfloat16),
                    preferred_element_type=jnp.float32)                 # [te, F]
    msg = (x_src + edge_feat) * ew_ref[...]                             # [te, F] f32

    # scatter-add this tile's messages into the resident node accumulator
    scatter_t = (dst_ref[...] ==
                 lax.broadcasted_iota(jnp.int32, (n_pad, te), 0)
                 ).astype(jnp.bfloat16)                                 # [N, te]
    agg_ref[...] += jnp.dot(scatter_t, msg.astype(jnp.bfloat16),
                            preferred_element_type=jnp.float32)

    # --- finalize: node Linear+ReLU, mean pool, TransferModel output MLP -----
    @pl.when(et == pl.num_programs(0) - 1)
    def _():
        node_emb = jnp.maximum(
            jnp.dot(agg_ref[...].astype(jnp.bfloat16), wn_ref[...],
                    preferred_element_type=jnp.float32) + bn_ref[...], 0.0)
        # NOTE: padded node rows are relu(b_node); with zero bias they are 0.
        ne_ref[...] = node_emb.astype(ne_ref.dtype)

        # global mean pool per graph (padded batch == -1 matches no graph row)
        pool = (batch_ref[...] ==
                lax.broadcasted_iota(jnp.int32, (b_pad, n_pad), 0)
                ).astype(jnp.float32)                                   # [B, N]
        counts = jnp.sum(pool, axis=1, keepdims=True)                   # [B, 1]
        z_graph = jnp.dot(pool.astype(jnp.bfloat16),
                          node_emb.astype(jnp.bfloat16),
                          preferred_element_type=jnp.float32)           # [B, EMB]
        z_graph = z_graph * pl.reciprocal(jnp.maximum(counts, 1.0), approx=True)

        # TransferModel.output_layer: Linear -> ReLU -> Linear
        h = jnp.maximum(
            jnp.dot(z_graph.astype(jnp.bfloat16), w1_ref[...],
                    preferred_element_type=jnp.float32) + b1_ref[...], 0.0)
        z = jnp.dot(h.astype(jnp.bfloat16), w2_ref[...],
                    preferred_element_type=jnp.float32) + b2_ref[...]
        z_ref[...] = z.astype(z_ref.dtype)


# ---------------------------------------------------------------------------
# Wrapper: pad ragged graph tensors (lane-dense), run one fused kernel
# ---------------------------------------------------------------------------
def transfer_model_forward(params, dims, batch, x, edge_index, edge_attr,
                           edge_weight=None, num_graphs=2, edge_tile=256):
    """forward(batch, x, edge_index, edge_attr, edge_weight) -> (z, node_emb)."""
    n, f = x.shape
    e, fe = edge_attr.shape
    if edge_weight is None:
        edge_weight = jnp.ones((e,), jnp.float32)

    fe_pad, f_pad = params["w_edge"].shape
    emb_pad = params["w_node"].shape[1]
    out_pad = params["w2"].shape[1]

    # Node / graph row padding.  Node count is also a one-hot LAST dim -> 128.
    n_pad = _round_up(n, LANE)
    b_pad = _round_up(num_graphs, SUBLANE)
    # Edge tiling: te is lane-dense; e_pad is a multiple of te.
    te = min(edge_tile, _round_up(e, LANE))
    e_pad = _round_up(e, te)
    n_edge_tiles = e_pad // te

    # Pad data tensors; padded index entries are -1 so they match no node/graph.
    x_p = jnp.pad(x.astype(jnp.float32), ((0, n_pad - n), (0, f_pad - f)))
    ea_p = jnp.pad(edge_attr.astype(jnp.float32),
                   ((0, e_pad - e), (0, fe_pad - fe)))
    src_p = jnp.pad(edge_index[0].astype(jnp.int32), (0, e_pad - e),
                    constant_values=-1)[:, None]                        # [E, 1]
    dst_p = jnp.pad(edge_index[1].astype(jnp.int32), (0, e_pad - e),
                    constant_values=-1)[None, :]                        # [1, E]
    ew_p = jnp.pad(edge_weight.astype(jnp.float32), (0, e_pad - e))[:, None]
    batch_p = jnp.pad(batch.astype(jnp.int32), (0, n_pad - n),
                      constant_values=-1)[None, :]                      # [1, N]

    in_specs = [
        pl.BlockSpec((n_pad, f_pad), lambda et: (0, 0)),        # x (all nodes)
        pl.BlockSpec((te, fe_pad), lambda et: (et, 0)),         # edge_attr tile
        pl.BlockSpec(params["w_edge"].shape, lambda et: (0, 0)),
        pl.BlockSpec((te, 1), lambda et: (et, 0)),              # src tile
        pl.BlockSpec((1, te), lambda et: (0, et)),              # dst tile
        pl.BlockSpec((te, 1), lambda et: (et, 0)),              # edge_weight tile
        pl.BlockSpec((1, n_pad), lambda et: (0, 0)),            # batch
        pl.BlockSpec(params["w_node"].shape, lambda et: (0, 0)),
        pl.BlockSpec(params["b_node"].shape, lambda et: (0, 0)),
        pl.BlockSpec(params["w1"].shape, lambda et: (0, 0)),
        pl.BlockSpec(params["b1"].shape, lambda et: (0, 0)),
        pl.BlockSpec(params["w2"].shape, lambda et: (0, 0)),
        pl.BlockSpec(params["b2"].shape, lambda et: (0, 0)),
    ]
    out_specs = [pl.BlockSpec((b_pad, out_pad), lambda et: (0, 0)),
                 pl.BlockSpec((n_pad, emb_pad), lambda et: (0, 0))]

    z_pad, ne_pad = pl.pallas_call(
        _fused_forward_kernel,
        out_shape=(jax.ShapeDtypeStruct((b_pad, out_pad), jnp.float32),
                   jax.ShapeDtypeStruct((n_pad, emb_pad), jnp.float32)),
        grid_spec=pltpu.PrefetchScalarGridSpec(
            num_scalar_prefetch=0,
            grid=(n_edge_tiles,),
            in_specs=in_specs,
            out_specs=out_specs,
            scratch_shapes=[pltpu.VMEM((n_pad, f_pad), jnp.float32)]),
        compiler_params=pltpu.CompilerParams(
            dimension_semantics=("arbitrary",),         # edge reduction axis
            vmem_limit_bytes=32 * 1024 * 1024),
    )(x_p, ea_p, params["w_edge"], src_p, dst_p, ew_p, batch_p,
      params["w_node"], params["b_node"], params["w1"], params["b1"],
      params["w2"], params["b2"])

    # Slice padded outputs back to logical sizes.
    z = z_pad[:num_graphs, :dims["out"]]
    node_emb = ne_pad[:n, :dims["emb"]]
    return z, node_emb


# ---------------------------------------------------------------------------
# Parameters (Xavier-uniform weights, zero biases — matches init_emb), padded
# once to lane multiples; weights stored bf16 (MXU operands), biases f32.
# ---------------------------------------------------------------------------
def xavier_uniform(key, fan_in, fan_out):
    bound = (6.0 / (fan_in + fan_out)) ** 0.5
    return jax.random.uniform(key, (fan_in, fan_out), jnp.float32, -bound, bound)


def make_params(key, f, fe, emb, hid, out):
    f_pad, fe_pad = _round_up(f, LANE), _round_up(fe, LANE)
    emb_pad, hid_pad, out_pad = (_round_up(d, LANE) for d in (emb, hid, out))
    ks = jax.random.split(key, 4)
    w_edge = xavier_uniform(ks[0], fe, f)
    w_node = xavier_uniform(ks[1], f, emb)
    w1 = xavier_uniform(ks[2], emb, hid)
    w2 = xavier_uniform(ks[3], hid, out)

    def padw(w, rows, cols):
        return jnp.pad(w, ((0, rows - w.shape[0]),
                           (0, cols - w.shape[1]))).astype(jnp.bfloat16)

    params = {
        "w_edge": padw(w_edge, fe_pad, f_pad),
        "w_node": padw(w_node, f_pad, emb_pad),
        "b_node": jnp.zeros((1, emb_pad), jnp.float32),
        "w1": padw(w1, emb_pad, hid_pad),
        "b1": jnp.zeros((1, hid_pad), jnp.float32),
        "w2": padw(w2, hid_pad, out_pad),
        "b2": jnp.zeros((1, out_pad), jnp.float32),
    }
    ref_params = {
        "w_edge": w_edge, "w_node": w_node,
        "b_node": jnp.zeros((emb,), jnp.float32),
        "w1": w1, "b1": jnp.zeros((hid,), jnp.float32),
        "w2": w2, "b2": jnp.zeros((out,), jnp.float32),
    }
    dims = {"f": f, "fe": fe, "emb": emb, "hid": hid, "out": out}
    return params, ref_params, dims


# ---------------------------------------------------------------------------
# Pure-JAX f32 reference (same semantics, unpadded) for correctness checks
# ---------------------------------------------------------------------------
def reference_forward(rp, batch, x, edge_index, edge_attr, edge_weight,
                      num_graphs):
    src, dst = edge_index[0], edge_index[1]
    n = x.shape[0]
    if edge_weight is None:
        edge_weight = jnp.ones((edge_index.shape[1],), jnp.float32)
    edge_feat = edge_attr @ rp["w_edge"]
    msg = (x[src] + edge_feat) * edge_weight[:, None]
    agg = x + jax.ops.segment_sum(msg, dst, num_segments=n)
    node_emb = jnp.maximum(agg @ rp["w_node"] + rp["b_node"], 0.0)
    pooled = jax.ops.segment_sum(node_emb, batch, num_segments=num_graphs)
    counts = jax.ops.segment_sum(jnp.ones((n,), jnp.float32), batch,
                                 num_segments=num_graphs)
    z_graph = pooled / jnp.maximum(counts, 1.0)[:, None]
    z = jnp.maximum(z_graph @ rp["w1"] + rp["b1"], 0.0) @ rp["w2"] + rp["b2"]
    return z, node_emb


if __name__ == "__main__":
    # 2 graphs, 16 nodes, node-feat 8, edge-feat 4, 32 edges,
    # encoder.out_graph_dim = 32, linear_layers = (32,), output_dim = 32.
    N, F_IN, FE, E, B = 16, 8, 4, 32, 2
    EMB, HID, OUT = 32, 32, 32

    key = jax.random.PRNGKey(0)
    k_data, k_param = jax.random.split(key)
    kd = jax.random.split(k_data, 4)

    x = jax.random.normal(kd[0], (N, F_IN), jnp.float32)
    edge_index = jax.random.randint(kd[1], (2, E), 0, N)
    edge_attr = jax.random.normal(kd[2], (E, FE), jnp.float32)
    edge_weight = jax.random.uniform(kd[3], (E,), jnp.float32)
    batch = jnp.repeat(jnp.arange(B, dtype=jnp.int32), N // B)

    params, ref_params, dims = make_params(k_param, F_IN, FE, EMB, HID, OUT)

    z, node_emb = transfer_model_forward(params, dims, batch, x, edge_index,
                                         edge_attr, edge_weight, num_graphs=B)
    jax.block_until_ready((z, node_emb))

    # Cross-check the fused bf16-MXU Pallas kernel against a pure-f32 JAX
    # reference; bf16 operands with f32 accumulation need a looser tolerance.
    z_ref, ne_ref = reference_forward(ref_params, batch, x, edge_index,
                                      edge_attr, edge_weight, B)
    assert z.shape == (B, OUT) and node_emb.shape == (N, EMB)
    assert jnp.allclose(node_emb, ne_ref, atol=5e-2, rtol=5e-2)
    assert jnp.allclose(z, z_ref, atol=5e-2, rtol=5e-2)

    print("KERNEL_OK")
</pallas_src>

<mosaic_0001>
module attributes {stable_mosaic.version = 11 : i64} {
  func.func @_fused_forward_kernel(%arg0: i32, %arg1: memref<128x128xf32, #tpu.memory_space<vmem>>, %arg2: memref<128x128xf32, #tpu.memory_space<vmem>>, %arg3: memref<128x128xbf16, #tpu.memory_space<vmem>>, %arg4: memref<128x1xi32, #tpu.memory_space<vmem>>, %arg5: memref<1x128xi32, #tpu.memory_space<vmem>>, %arg6: memref<128x1xf32, #tpu.memory_space<vmem>>, %arg7: memref<1x128xi32, #tpu.memory_space<vmem>>, %arg8: memref<128x128xbf16, #tpu.memory_space<vmem>>, %arg9: memref<1x128xf32, #tpu.memory_space<vmem>>, %arg10: memref<128x128xbf16, #tpu.memory_space<vmem>>, %arg11: memref<1x128xf32, #tpu.memory_space<vmem>>, %arg12: memref<128x128xbf16, #tpu.memory_space<vmem>>, %arg13: memref<1x128xf32, #tpu.memory_space<vmem>>, %arg14: memref<8x128xf32, #tpu.memory_space<vmem>>, %arg15: memref<128x128xf32, #tpu.memory_space<vmem>>, %arg16: memref<128x128xf32, #tpu.memory_space<vmem>>) attributes {dimension_semantics = [#tpu.dimension_semantics<arbitrary>], iteration_bounds = array<i64: 1>, scalar_prefetch = 0 : i64, scratch_operands = 1 : i64, tpu.core_type = #tpu.core_type<tc>, window_params = [{pipeline_mode = #tpu.pipeline_mode<synchronous>, transform_indices = @transform_0, window_bounds = array<i64: 128, 128>}, {transform_indices = @transform_1, window_bounds = array<i64: 128, 128>}, {pipeline_mode = #tpu.pipeline_mode<synchronous>, transform_indices = @transform_2, window_bounds = array<i64: 128, 128>}, {transform_indices = @transform_3, window_bounds = array<i64: 128, 1>}, {transform_indices = @transform_4, window_bounds = array<i64: 1, 128>}, {transform_indices = @transform_5, window_bounds = array<i64: 128, 1>}, {pipeline_mode = #tpu.pipeline_mode<synchronous>, transform_indices = @transform_6, window_bounds = array<i64: 1, 128>}, {pipeline_mode = #tpu.pipeline_mode<synchronous>, transform_indices = @transform_7, window_bounds = array<i64: 128, 128>}, {pipeline_mode = #tpu.pipeline_mode<synchronous>, transform_indices = @transform_8, window_bounds = array<i64: 1, 128>}, {pipeline_mode = #tpu.pipeline_mode<synchronous>, transform_indices = @transform_9, window_bounds = array<i64: 128, 128>}, {pipeline_mode = #tpu.pipeline_mode<synchronous>, transform_indices = @transform_10, window_bounds = array<i64: 1, 128>}, {pipeline_mode = #tpu.pipeline_mode<synchronous>, transform_indices = @transform_11, window_bounds = array<i64: 128, 128>}, {pipeline_mode = #tpu.pipeline_mode<synchronous>, transform_indices = @transform_12, window_bounds = array<i64: 1, 128>}, {pipeline_mode = #tpu.pipeline_mode<synchronous>, transform_indices = @transform_13, window_bounds = array<i64: 8, 128>}, {pipeline_mode = #tpu.pipeline_mode<synchronous>, transform_indices = @transform_14, window_bounds = array<i64: 128, 128>}]} {
    %c0_i32 = arith.constant 0 : i32
    %0 = arith.cmpi eq, %arg0, %c0_i32 : i32
    %1 = arith.extui %0 : i1 to i32
    %c0_i32_0 = arith.constant 0 : i32
    %2 = arith.cmpi ne, %1, %c0_i32_0 : i32
    scf.if %2 {
      %c0_20 = arith.constant 0 : index
      %c0_21 = arith.constant 0 : index
      %36 = vector.load %arg1[%c0_20, %c0_21] : memref<128x128xf32, #tpu.memory_space<vmem>>, vector<128x128xf32>
      %c0_22 = arith.constant 0 : index
      %c0_23 = arith.constant 0 : index
      %37 = vector.load %arg16[%c0_22, %c0_23] : memref<128x128xf32, #tpu.memory_space<vmem>>, vector<128x128xf32>
      tpu.vector_store %arg16[%c0_22, %c0_23], %36 {strides = array<i32>} : memref<128x128xf32, #tpu.memory_space<vmem>>, vector<128x128xf32>,
    } else {
    }
    %c0 = arith.constant 0 : index
    %c0_1 = arith.constant 0 : index
    %3 = vector.load %arg2[%c0, %c0_1] : memref<128x128xf32, #tpu.memory_space<vmem>>, vector<128x128xf32>
    %4 = arith.truncf %3 : vector<128x128xf32> to vector<128x128xbf16>
    %c0_2 = arith.constant 0 : index
    %c0_3 = arith.constant 0 : index
    %5 = vector.load %arg3[%c0_2, %c0_3] : memref<128x128xbf16, #tpu.memory_space<vmem>>, vector<128x128xbf16>
    %cst = arith.constant dense<0.000000e+00> : vector<128x128xf32>
    %6 = tpu.matmul %4, %5, %cst {dimension_numbers = #tpu.dot_dimension_numbers<[1], [0], [0], [1], [0, 0, 1, 1], [], []>} : vector<128x128xbf16>, vector<128x128xbf16>, vector<128x128xf32> -> vector<128x128xf32>
    %c0_4 = arith.constant 0 : index
    %c0_5 = arith.constant 0 : index
    %7 = vector.load %arg4[%c0_4, %c0_5] : memref<128x1xi32, #tpu.memory_space<vmem>>, vector<128x1xi32>
    %8 = tpu.iota {dimensions = array<i32: 1>} : vector<128x128xi32>
    %9 = vector.broadcast %7 : vector<128x1xi32> to vector<128x128xi32>
    %10 = arith.cmpi eq, %9, %8 : vector<128x128xi32>
    %11 = arith.extui %10 : vector<128x128xi1> to vector<128x128xi32>
    %12 = arith.sitofp %11 : vector<128x128xi32> to vector<128x128xf32>
    %13 = arith.truncf %12 : vector<128x128xf32> to vector<128x128xbf16>
    %c0_6 = arith.constant 0 : index
    %c0_7 = arith.constant 0 : index
    %14 = vector.load %arg1[%c0_6, %c0_7] : memref<128x128xf32, #tpu.memory_space<vmem>>, vector<128x128xf32>
    %15 = arith.truncf %14 : vector<128x128xf32> to vector<128x128xbf16>
    %cst_8 = arith.constant dense<0.000000e+00> : vector<128x128xf32>
    %16 = tpu.matmul %13, %15, %cst_8 {dimension_numbers = #tpu.dot_dimension_numbers<[1], [0], [0], [1], [0, 0, 1, 1], [], []>} : vector<128x128xbf16>, vector<128x128xbf16>, vector<128x128xf32> -> vector<128x128xf32>
    %17 = arith.addf %16, %6 : vector<128x128xf32>
    %c0_9 = arith.constant 0 : index
    %c0_10 = arith.constant 0 : index
    %18 = vector.load %arg6[%c0_9, %c0_10] : memref<128x1xf32, #tpu.memory_space<vmem>>, vector<128x1xf32>
    %19 = vector.broadcast %18 : vector<128x1xf32> to vector<128x128xf32>
    %20 = arith.mulf %17, %19 : vector<128x128xf32>
    %c0_11 = arith.constant 0 : index
    %c0_12 = arith.constant 0 : index
    %21 = vector.load %arg5[%c0_11, %c0_12] : memref<1x128xi32, #tpu.memory_space<vmem>>, vector<1x128xi32>
    %22 = tpu.iota {dimensions = array<i32: 0>} : vector<128x128xi32>
    %23 = vector.broadcast %21 : vector<1x128xi32> to vector<128x128xi32>
    %24 = arith.cmpi eq, %23, %22 : vector<128x128xi32>
    %25 = arith.extui %24 : vector<128x128xi1> to vector<128x128xi32>
    %26 = arith.sitofp %25 : vector<128x128xi32> to vector<128x128xf32>
    %27 = arith.truncf %26 : vector<128x128xf32> to vector<128x128xbf16>
    %c0_13 = arith.constant 0 : index
    %c0_14 = arith.constant 0 : index
    %28 = vector.load %arg16[%c0_13, %c0_14] : memref<128x128xf32, #tpu.memory_space<vmem>>, vector<128x128xf32>
    %29 = arith.truncf %20 : vector<128x128xf32> to vector<128x128xbf16>
    %cst_15 = arith.constant dense<0.000000e+00> : vector<128x128xf32>
    %30 = tpu.matmul %27, %29, %cst_15 {dimension_numbers = #tpu.dot_dimension_numbers<[1], [0], [0], [1], [0, 0, 1, 1], [], []>} : vector<128x128xbf16>, vector<128x128xbf16>, vector<128x128xf32> -> vector<128x128xf32>
    %31 = arith.addf %28, %30 : vector<128x128xf32>
    %c0_16 = arith.constant 0 : index
    %c0_17 = arith.constant 0 : index
    %32 = vector.load %arg16[%c0_16, %c0_17] : memref<128x128xf32, #tpu.memory_space<vmem>>, vector<128x128xf32>
    tpu.vector_store %arg16[%c0_16, %c0_17], %31 {strides = array<i32>} : memref<128x128xf32, #tpu.memory_space<vmem>>, vector<128x128xf32>,
    %c0_i32_18 = arith.constant 0 : i32
    %33 = arith.cmpi eq, %arg0, %c0_i32_18 : i32
    %34 = arith.extui %33 : i1 to i32
    %c0_i32_19 = arith.constant 0 : i32
    %35 = arith.cmpi ne, %34, %c0_i32_19 : i32
    scf.if %35 {
      %c0_20 = arith.constant 0 : index
      %c0_21 = arith.constant 0 : index
      %36 = vector.load %arg16[%c0_20, %c0_21] : memref<128x128xf32, #tpu.memory_space<vmem>>, vector<128x128xf32>
      %37 = arith.truncf %36 : vector<128x128xf32> to vector<128x128xbf16>
      %c0_22 = arith.constant 0 : index
      %c0_23 = arith.constant 0 : index
      %38 = vector.load %arg8[%c0_22, %c0_23] : memref<128x128xbf16, #tpu.memory_space<vmem>>, vector<128x128xbf16>
      %cst_24 = arith.constant dense<0.000000e+00> : vector<128x128xf32>
      %39 = tpu.matmul %37, %38, %cst_24 {dimension_numbers = #tpu.dot_dimension_numbers<[1], [0], [0], [1], [0, 0, 1, 1], [], []>} : vector<128x128xbf16>, vector<128x128xbf16>, vector<128x128xf32> -> vector<128x128xf32>
      %c0_25 = arith.constant 0 : index
      %c0_26 = arith.constant 0 : index
      %40 = vector.load %arg9[%c0_25, %c0_26] : memref<1x128xf32, #tpu.memory_space<vmem>>, vector<1x128xf32>
      %41 = vector.broadcast %40 : vector<1x128xf32> to vector<128x128xf32>
      %42 = arith.addf %39, %41 : vector<128x128xf32>
      %cst_27 = arith.constant 0.000000e+00 : f32
      %43 = vector.broadcast %cst_27 : f32 to vector<128x128xf32>
      %44 = arith.maximumf %42, %43 : vector<128x128xf32>
      %c0_28 = arith.constant 0 : index
      %c0_29 = arith.constant 0 : index
      %45 = vector.load %arg15[%c0_28, %c0_29] : memref<128x128xf32, #tpu.memory_space<vmem>>, vector<128x128xf32>
      tpu.vector_store %arg15[%c0_28, %c0_29], %44 {strides = array<i32>} : memref<128x128xf32, #tpu.memory_space<vmem>>, vector<128x128xf32>,
      %c0_30 = arith.constant 0 : index
      %c0_31 = arith.constant 0 : index
      %46 = vector.load %arg7[%c0_30, %c0_31] : memref<1x128xi32, #tpu.memory_space<vmem>>, vector<1x128xi32>
      %47 = tpu.iota {dimensions = array<i32: 0>} : vector<8x128xi32>
      %48 = vector.broadcast %46 : vector<1x128xi32> to vector<8x128xi32>
      %49 = arith.cmpi eq, %48, %47 : vector<8x128xi32>
      %50 = arith.extui %49 : vector<8x128xi1> to vector<8x128xi32>
      %51 = arith.sitofp %50 : vector<8x128xi32> to vector<8x128xf32>
      %cst_32 = arith.constant dense<0.000000e+00> : vector<8xf32>
      %52 = vector.multi_reduction <add>, %51, %cst_32 [1] : vector<8x128xf32> to vector<8xf32>
      %53 = vector.shape_cast %52 : vector<8xf32> to vector<8x1xf32>
      %54 = arith.truncf %51 : vector<8x128xf32> to vector<8x128xbf16>
      %55 = arith.truncf %44 : vector<128x128xf32> to vector<128x128xbf16>
      %cst_33 = arith.constant dense<0.000000e+00> : vector<8x128xf32>
      %56 = tpu.matmul %54, %55, %cst_33 {dimension_numbers = #tpu.dot_dimension_numbers<[1], [0], [0], [1], [0, 0, 1, 1], [], []>} : vector<8x128xbf16>, vector<128x128xbf16>, vector<8x128xf32> -> vector<8x128xf32>
      %cst_34 = arith.constant 1.000000e+00 : f32
      %57 = vector.broadcast %cst_34 : f32 to vector<8x1xf32>
      %58 = arith.maximumf %53, %57 : vector<8x1xf32>
      %59 = tpu.reciprocal %58 {approx = true} : vector<8x1xf32> -> vector<8x1xf32>
      %60 = vector.broadcast %59 : vector<8x1xf32> to vector<8x128xf32>
      %61 = arith.mulf %56, %60 : vector<8x128xf32>
      %62 = arith.truncf %61 : vector<8x128xf32> to vector<8x128xbf16>
      %c0_35 = arith.constant 0 : index
      %c0_36 = arith.constant 0 : index
      %63 = vector.load %arg10[%c0_35, %c0_36] : memref<128x128xbf16, #tpu.memory_space<vmem>>, vector<128x128xbf16>
      %cst_37 = arith.constant dense<0.000000e+00> : vector<8x128xf32>
      %64 = tpu.matmul %62, %63, %cst_37 {dimension_numbers = #tpu.dot_dimension_numbers<[1], [0], [0], [1], [0, 0, 1, 1], [], []>} : vector<8x128xbf16>, vector<128x128xbf16>, vector<8x128xf32> -> vector<8x128xf32>
      %c0_38 = arith.constant 0 : index
      %c0_39 = arith.constant 0 : index
      %65 = vector.load %arg11[%c0_38, %c0_39] : memref<1x128xf32, #tpu.memory_space<vmem>>, vector<1x128xf32>
      %66 = vector.broadcast %65 : vector<1x128xf32> to vector<8x128xf32>
      %67 = arith.addf %64, %66 : vector<8x128xf32>
      %cst_40 = arith.constant 0.000000e+00 : f32
      %68 = vector.broadcast %cst_40 : f32 to vector<8x128xf32>
      %69 = arith.maximumf %67, %68 : vector<8x128xf32>
      %70 = arith.truncf %69 : vector<8x128xf32> to vector<8x128xbf16>
      %c0_41 = arith.constant 0 : index
      %c0_42 = arith.constant 0 : index
      %71 = vector.load %arg12[%c0_41, %c0_42] : memref<128x128xbf16, #tpu.memory_space<vmem>>, vector<128x128xbf16>
      %cst_43 = arith.constant dense<0.000000e+00> : vector<8x128xf32>
      %72 = tpu.matmul %70, %71, %cst_43 {dimension_numbers = #tpu.dot_dimension_numbers<[1], [0], [0], [1], [0, 0, 1, 1], [], []>} : vector<8x128xbf16>, vector<128x128xbf16>, vector<8x128xf32> -> vector<8x128xf32>
      %c0_44 = arith.constant 0 : index
      %c0_45 = arith.constant 0 : index
      %73 = vector.load %arg13[%c0_44, %c0_45] : memref<1x128xf32, #tpu.memory_space<vmem>>, vector<1x128xf32>
      %74 = vector.broadcast %73 : vector<1x128xf32> to vector<8x128xf32>
      %75 = arith.addf %72, %74 : vector<8x128xf32>
      %c0_46 = arith.constant 0 : index
      %c0_47 = arith.constant 0 : index
      %76 = vector.load %arg14[%c0_46, %c0_47] : memref<8x128xf32, #tpu.memory_space<vmem>>, vector<8x128xf32>
      tpu.vector_store %arg14[%c0_46, %c0_47], %75 {strides = array<i32>} : memref<8x128xf32, #tpu.memory_space<vmem>>, vector<8x128xf32>,
    } else {
    }
    return
  }
  func.func @transform_0(%arg0: i32) -> (i32, i32) {
    %c0_i32 = arith.constant 0 : i32
    %c0_i32_0 = arith.constant 0 : i32
    %c0_i32_1 = arith.constant 0 : i32
    return %c0_i32, %c0_i32_0 : i32, i32
  }
  func.func @transform_1(%arg0: i32) -> (i32, i32) {
    %c0_i32 = arith.constant 0 : i32
    %c0_i32_0 = arith.constant 0 : i32
    return %arg0, %c0_i32 : i32, i32
  }
  func.func @transform_2(%arg0: i32) -> (i32, i32) {
    %c0_i32 = arith.constant 0 : i32
    %c0_i32_0 = arith.constant 0 : i32
    %c0_i32_1 = arith.constant 0 : i32
    return %c0_i32, %c0_i32_0 : i32, i32
  }
  func.func @transform_3(%arg0: i32) -> (i32, i32) {
    %c0_i32 = arith.constant 0 : i32
    %c0_i32_0 = arith.constant 0 : i32
    return %arg0, %c0_i32 : i32, i32
  }
  func.func @transform_4(%arg0: i32) -> (i32, i32) {
    %c0_i32 = arith.constant 0 : i32
    %c0_i32_0 = arith.constant 0 : i32
    return %c0_i32, %arg0 : i32, i32
  }
  func.func @transform_5(%arg0: i32) -> (i32, i32) {
    %c0_i32 = arith.constant 0 : i32
    %c0_i32_0 = arith.constant 0 : i32
    return %arg0, %c0_i32 : i32, i32
  }
  func.func @transform_6(%arg0: i32) -> (i32, i32) {
    %c0_i32 = arith.constant 0 : i32
    %c0_i32_0 = arith.constant 0 : i32
    %c0_i32_1 = arith.constant 0 : i32
    return %c0_i32, %c0_i32_0 : i32, i32
  }
  func.func @transform_7(%arg0: i32) -> (i32, i32) {
    %c0_i32 = arith.constant 0 : i32
    %c0_i32_0 = arith.constant 0 : i32
    %c0_i32_1 = arith.constant 0 : i32
    return %c0_i32, %c0_i32_0 : i32, i32
  }
  func.func @transform_8(%arg0: i32) -> (i32, i32) {
    %c0_i32 = arith.constant 0 : i32
    %c0_i32_0 = arith.constant 0 : i32
    %c0_i32_1 = arith.constant 0 : i32
    return %c0_i32, %c0_i32_0 : i32, i32
  }
  func.func @transform_9(%arg0: i32) -> (i32, i32) {
    %c0_i32 = arith.constant 0 : i32
    %c0_i32_0 = arith.constant 0 : i32
    %c0_i32_1 = arith.constant 0 : i32
    return %c0_i32, %c0_i32_0 : i32, i32
  }
  func.func @transform_10(%arg0: i32) -> (i32, i32) {
    %c0_i32 = arith.constant 0 : i32
    %c0_i32_0 = arith.constant 0 : i32
    %c0_i32_1 = arith.constant 0 : i32
    return %c0_i32, %c0_i32_0 : i32, i32
  }
  func.func @transform_11(%arg0: i32) -> (i32, i32) {
    %c0_i32 = arith.constant 0 : i32
    %c0_i32_0 = arith.constant 0 : i32
    %c0_i32_1 = arith.constant 0 : i32
    return %c0_i32, %c0_i32_0 : i32, i32
  }
  func.func @transform_12(%arg0: i32) -> (i32, i32) {
    %c0_i32 = arith.constant 0 : i32
    %c0_i32_0 = arith.constant 0 : i32
    %c0_i32_1 = arith.constant 0 : i32
    return %c0_i32, %c0_i32_0 : i32, i32
  }
  func.func @transform_13(%arg0: i32) -> (i32, i32) {
    %c0_i32 = arith.constant 0 : i32
    %c0_i32_0 = arith.constant 0 : i32
    %c0_i32_1 = arith.constant 0 : i32
    return %c0_i32, %c0_i32_0 : i32, i32
  }
  func.func @transform_14(%arg0: i32) -> (i32, i32) {
    %c0_i32 = arith.constant 0 : i32
    %c0_i32_0 = arith.constant 0 : i32
    %c0_i32_1 = arith.constant 0 : i32
    return %c0_i32, %c0_i32_0 : i32, i32
  }
}

</mosaic_0001>

<llo_original>
// kernel: tpu_custom_call.1
$region0: #{tpu_custom_call.1}
  #allocation0 [shape = 'u32[]', space=smem, size = 0x4, offset = 0x4, fixed_abs, tag = 'smem constant byte address 0x4 - core index']
  #allocation1 [shape = 'u32[144,128]{1,0:T(1,128)}', space=vmem, size = 0x12000, scoped, tag = 'internal scratch']
  #allocation2 [shape = 'f32[128,128]{1,0:T(8,128)}', space=vmem, size = 0x10000, scoped, tag = 'scratch operand']
  %s0 = inlined_call_operand.vmem [shape: f32[128,128], index: 0, kind: input, shape index: {}]
  %s1 = inlined_call_operand.vmem [shape: f32[128,128], index: 1, kind: input, shape index: {}]
  %s2 = inlined_call_operand.hbm [shape: bf16[128,128], index: 2, kind: input, shape index: {}]
  %s3 = inlined_call_operand.vmem [shape: s32[128,1], index: 3, kind: input, shape index: {}]
  %s4 = inlined_call_operand.vmem [shape: s32[1,128], index: 4, kind: input, shape index: {}]
  %s5 = inlined_call_operand.vmem [shape: f32[128,1], index: 5, kind: input, shape index: {}]
  %s6 = inlined_call_operand.vmem [shape: s32[1,128], index: 6, kind: input, shape index: {}]
  %s7 = inlined_call_operand.hbm [shape: bf16[128,128], index: 7, kind: input, shape index: {}]
  %s8 = inlined_call_operand.vmem [shape: f32[1,128], index: 8, kind: input, shape index: {}]
  %s9 = inlined_call_operand.hbm [shape: bf16[128,128], index: 9, kind: input, shape index: {}]
  %s10 = inlined_call_operand.vmem [shape: f32[1,128], index: 10, kind: input, shape index: {}]
  %s11 = inlined_call_operand.hbm [shape: bf16[128,128], index: 11, kind: input, shape index: {}]
  %s12 = inlined_call_operand.vmem [shape: f32[1,128], index: 12, kind: input, shape index: {}]
  %s13 = inlined_call_operand.hbm [shape: f32[8,128], index: 13, kind: output, shape index: {0}]
  %s14 = inlined_call_operand.hbm [shape: f32[128,128], index: 14, kind: output, shape index: {1}]
  %15 = xla_tuple %s13, %s14
  %s16 = sld [smem:[#allocation0]]
  $region94: #{tpu_custom_call.1} parent=0
    _
  %s18 = ssub.s32 1, %s16
  %s19 = scalar_select 0, %s18, %s16
  $region1: #{tpu_custom_call.1} parent=0
    #allocation3 [shape = 'u8[32768]{0}', space=vmem, size = 0x8000, scoped, tag = 'input window, operand 2, single buffered']
    #allocation4 [shape = 's32[1]{0}', space=sflag, size = 0x4, scoped, tag = 'scoped memory for tpu_custom_call.1']
    #allocation5 [shape = 's32[1]{0}', space=sflag, size = 0x4, scoped, tag = 'scoped memory for tpu_custom_call.1']
    #allocation6 [shape = 'u8[32768]{0}', space=vmem, size = 0x8000, scoped, tag = 'input window, operand 7, single buffered']
    #allocation7 [shape = 's32[1]{0}', space=sflag, size = 0x4, scoped, tag = 'scoped memory for tpu_custom_call.1']
    #allocation8 [shape = 'u8[32768]{0}', space=vmem, size = 0x8000, scoped, tag = 'input window, operand 9, single buffered']
    #allocation9 [shape = 'u8[32768]{0}', space=vmem, size = 0x8000, scoped, tag = 'input window, operand 11, single buffered']
    #allocation10 [shape = 's32[1]{0}', space=sflag, size = 0x4, scoped, tag = 'scoped memory for tpu_custom_call.1']
    #allocation11 [shape = 'u8[4096]{0}', space=vmem, size = 0x1000, scoped, tag = 'output window, operand 0, single buffered']
    #allocation12 [shape = 'u8[65536]{0}', space=vmem, size = 0x10000, scoped, tag = 'output window, operand 1, single buffered']
    #allocation13 [shape = 's32[1]{0}', space=sflag, size = 0x4, scoped, tag = 'scoped memory for tpu_custom_call.1']
    %20 = vsyncpa [#allocation4], 0
    %21 = vsyncpa [#allocation7], 0
    %22 = vsyncpa [#allocation10], 0
    %23 = vsyncpa [#allocation5], 0
    %24 = vsyncpa [#allocation13], 0
    // Predicated region
    $region2: #{tpu_custom_call.1} parent=1 // pred_check
      _
    $region3: #{tpu_custom_call.1} parent=1 // pred_check_branch
      %26 = sbr.rel (0) target = $region5
    $region4: #{tpu_custom_call.1} parent=1 // pred_region
      _
    $region5: #{tpu_custom_call.1} parent=1 // pred_fallthru
      _
    // Predicated region
    $region6: #{tpu_custom_call.1} parent=1 // pred_check
      _
    $region7: #{tpu_custom_call.1} parent=1 // pred_check_branch
      %28 = sbr.rel (0) target = $region9
    $region8: #{tpu_custom_call.1} parent=1 // pred_region
      _
    $region9: #{tpu_custom_call.1} parent=1 // pred_fallthru
      _
    // Predicated region
    $region10: #{tpu_custom_call.1} parent=1 // pred_check
      _
    $region11: #{tpu_custom_call.1} parent=1 // pred_check_branch
      %30 = sbr.rel (0) target = $region13
    $region12: #{tpu_custom_call.1} parent=1 // pred_region
      %s32 = ssub.s32 1024, 1024
      %33 = vsyncadd [#allocation4], %s32
      %s34 = sshll.u32 [#allocation3], 4
      %s35 = int_to_ptr.vmem [resolvable:$true] %s34
      %40 = dma.hbm_to_vmem [thread:$0]  %s2, 1024, %s35, [#allocation4], 64, 64, 4
    $region13: #{tpu_custom_call.1} parent=1 // pred_fallthru
      _
    // Predicated region
    $region14: #{tpu_custom_call.1} parent=1 // pred_check
      _
    $region15: #{tpu_custom_call.1} parent=1 // pred_check_branch
      %42 = sbr.rel (0) target = $region17
    $region16: #{tpu_custom_call.1} parent=1 // pred_region
      _
    $region17: #{tpu_custom_call.1} parent=1 // pred_fallthru
      _
    // Predicated region
    $region18: #{tpu_custom_call.1} parent=1 // pred_check
      _
    $region19: #{tpu_custom_call.1} parent=1 // pred_check_branch
      %44 = sbr.rel (0) target = $region21
    $region20: #{tpu_custom_call.1} parent=1 // pred_region
      _
    $region21: #{tpu_custom_call.1} parent=1 // pred_fallthru
      _
    // Predicated region
    $region22: #{tpu_custom_call.1} parent=1 // pred_check
      _
    $region23: #{tpu_custom_call.1} parent=1 // pred_check_branch
      %46 = sbr.rel (0) target = $region25
    $region24: #{tpu_custom_call.1} parent=1 // pred_region
      _
    $region25: #{tpu_custom_call.1} parent=1 // pred_fallthru
      _
    // Predicated region
    $region26: #{tpu_custom_call.1} parent=1 // pred_check
      _
    $region27: #{tpu_custom_call.1} parent=1 // pred_check_branch
      %48 = sbr.rel (0) target = $region29
    $region28: #{tpu_custom_call.1} parent=1 // pred_region
      _
    $region29: #{tpu_custom_call.1} parent=1 // pred_fallthru
      _
    // Predicated region
    $region30: #{tpu_custom_call.1} parent=1 // pred_check
      _
    $region31: #{tpu_custom_call.1} parent=1 // pred_check_branch
      %50 = sbr.rel (0) target = $region33
    $region32: #{tpu_custom_call.1} parent=1 // pred_region
      %s52 = ssub.s32 1024, 1024
      %53 = vsyncadd [#allocation7], %s52
      %s54 = sshll.u32 [#allocation6], 4
      %s55 = int_to_ptr.vmem [resolvable:$true] %s54
      %60 = dma.hbm_to_vmem [thread:$0]  %s7, 1024, %s55, [#allocation7], 64, 64, 4
    $region33: #{tpu_custom_call.1} parent=1 // pred_fallthru
      _
    // Predicated region
    $region34: #{tpu_custom_call.1} parent=1 // pred_check
      _
    $region35: #{tpu_custom_call.1} parent=1 // pred_check_branch
      %62 = sbr.rel (0) target = $region37
    $region36: #{tpu_custom_call.1} parent=1 // pred_region
      _
    $region37: #{tpu_custom_call.1} parent=1 // pred_fallthru
      _
    // Predicated region
    $region38: #{tpu_custom_call.1} parent=1 // pred_check
      _
    $region39: #{tpu_custom_call.1} parent=1 // pred_check_branch
      %64 = sbr.rel (0) target = $region41
    $region40: #{tpu_custom_call.1} parent=1 // pred_region
      %s66 = ssub.s32 1024, 1024
      %67 = vsyncadd [#allocation7], %s66
      %s68 = sshll.u32 [#allocation8], 4
      %s69 = int_to_ptr.vmem [resolvable:$true] %s68
      %74 = dma.hbm_to_vmem [thread:$0]  %s9, 1024, %s69, [#allocation7], 64, 64, 4
    $region41: #{tpu_custom_call.1} parent=1 // pred_fallthru
      _
    // Predicated region
    $region42: #{tpu_custom_call.1} parent=1 // pred_check
      _
    $region43: #{tpu_custom_call.1} parent=1 // pred_check_branch
      %76 = sbr.rel (0) target = $region45
    $region44: #{tpu_custom_call.1} parent=1 // pred_region
      _
    $region45: #{tpu_custom_call.1} parent=1 // pred_fallthru
      _
    // Predicated region
    $region46: #{tpu_custom_call.1} parent=1 // pred_check
      _
    $region47: #{tpu_custom_call.1} parent=1 // pred_check_branch
      %78 = sbr.rel (0) target = $region49
    $region48: #{tpu_custom_call.1} parent=1 // pred_region
      %s80 = ssub.s32 1024, 1024
      %81 = vsyncadd [#allocation10], %s80
      %s82 = sshll.u32 [#allocation9], 4
      %s83 = int_to_ptr.vmem [resolvable:$true] %s82
      %88 = dma.hbm_to_vmem [thread:$0]  %s11, 1024, %s83, [#allocation10], 64, 64, 4
    $region49: #{tpu_custom_call.1} parent=1 // pred_fallthru
      _
    // Predicated region
    $region50: #{tpu_custom_call.1} parent=1 // pred_check
      _
    $region51: #{tpu_custom_call.1} parent=1 // pred_check_branch
      %90 = sbr.rel (0) target = $region53
    $region52: #{tpu_custom_call.1} parent=1 // pred_region
      _
    $region53: #{tpu_custom_call.1} parent=1 // pred_fallthru
      _
    // Predicated region
    $region54: #{tpu_custom_call.1} parent=1 // pred_check
      _
    $region55: #{tpu_custom_call.1} parent=1 // pred_check_branch
      %92 = sbr.rel (0) target = $region57
    $region56: #{tpu_custom_call.1} parent=1 // pred_region
      %93 = dma.done [#allocation4], 1024
    $region57: #{tpu_custom_call.1} parent=1 // pred_fallthru
      _
    // Predicated region
    $region58: #{tpu_custom_call.1} parent=1 // pred_check
      _
    $region59: #{tpu_custom_call.1} parent=1 // pred_check_branch
      %95 = sbr.rel (0) target = $region61
    $region60: #{tpu_custom_call.1} parent=1 // pred_region
      %96 = dma.done [#allocation7], 1024
    $region61: #{tpu_custom_call.1} parent=1 // pred_fallthru
      _
    // Predicated region
    $region62: #{tpu_custom_call.1} parent=1 // pred_check
      _
    $region63: #{tpu_custom_call.1} parent=1 // pred_check_branch
      %98 = sbr.rel (0) target = $region65
    $region64: #{tpu_custom_call.1} parent=1 // pred_region
      %99 = dma.done [#allocation7], 1024
    $region65: #{tpu_custom_call.1} parent=1 // pred_fallthru
      _
    // Predicated region
    $region66: #{tpu_custom_call.1} parent=1 // pred_check
      _
    $region67: #{tpu_custom_call.1} parent=1 // pred_check_branch
      %101 = sbr.rel (0) target = $region69
    $region68: #{tpu_custom_call.1} parent=1 // pred_region
      %102 = dma.done [#allocation10], 1024
    $region69: #{tpu_custom_call.1} parent=1 // pred_fallthru
      _
    %p104 = scmp.eq.s32.totalorder 0, 0
    // Predicated region
    $region70: #{tpu_custom_call.1} parent=1 // pred_check
      %p105 = pneg %p104
    $region71: #{tpu_custom_call.1} parent=1 // pred_check_branch
      %107 = sbr.rel (%p105) target = $region73
    $region72: #{tpu_custom_call.1} parent=1 // pred_region
      %v108 = vld [vmem:[%s0] sm:$0xff]
      %v109 = vld [vmem:[%s0 + $0x8] sm:$0xff]
      %v110 = vld [vmem:[%s0 + $0x10] sm:$0xff]
      %v111 = vld [vmem:[%s0 + $0x18] sm:$0xff]
      %v112 = vld [vmem:[%s0 + $0x20] sm:$0xff]
      %v113 = vld [vmem:[%s0 + $0x28] sm:$0xff]
      %v114 = vld [vmem:[%s0 + $0x30] sm:$0xff]
      %v115 = vld [vmem:[%s0 + $0x38] sm:$0xff]
      %v116 = vld [vmem:[%s0 + $0x40] sm:$0xff]
      %v117 = vld [vmem:[%s0 + $0x48] sm:$0xff]
      %v118 = vld [vmem:[%s0 + $0x50] sm:$0xff]
      %v119 = vld [vmem:[%s0 + $0x58] sm:$0xff]
      %v120 = vld [vmem:[%s0 + $0x60] sm:$0xff]
      %v121 = vld [vmem:[%s0 + $0x68] sm:$0xff]
      %v122 = vld [vmem:[%s0 + $0x70] sm:$0xff]
      %v123 = vld [vmem:[%s0 + $0x78] sm:$0xff]
      %124 = vst [vmem:[#allocation2] sm:$0xff] %v108
      %125 = vst [vmem:[#allocation2 + $0x8] sm:$0xff] %v109
      %126 = vst [vmem:[#allocation2 + $0x10] sm:$0xff] %v110
      %127 = vst [vmem:[#allocation2 + $0x18] sm:$0xff] %v111
      %128 = vst [vmem:[#allocation2 + $0x20] sm:$0xff] %v112
      %129 = vst [vmem:[#allocation2 + $0x28] sm:$0xff] %v113
      %130 = vst [vmem:[#allocation2 + $0x30] sm:$0xff] %v114
      %131 = vst [vmem:[#allocation2 + $0x38] sm:$0xff] %v115
      %132 = vst [vmem:[#allocation2 + $0x40] sm:$0xff] %v116
      %133 = vst [vmem:[#allocation2 + $0x48] sm:$0xff] %v117
      %134 = vst [vmem:[#allocation2 + $0x50] sm:$0xff] %v118
      %135 = vst [vmem:[#allocation2 + $0x58] sm:$0xff] %v119
      %136 = vst [vmem:[#allocation2 + $0x60] sm:$0xff] %v120
      %137 = vst [vmem:[#allocation2 + $0x68] sm:$0xff] %v121
      %138 = vst [vmem:[#allocation2 + $0x70] sm:$0xff] %v122
      %139 = vst [vmem:[#allocation2 + $0x78] sm:$0xff] %v123
    $region73: #{tpu_custom_call.1} parent=1 // pred_fallthru
      _
    %v140 = vld [vmem:[%s1] sm:$0xff]
    %v141 = vld [vmem:[%s1 + $0x8] sm:$0xff]
    %v142 = vld [vmem:[%s1 + $0x10] sm:$0xff]
    %v143 = vld [vmem:[%s1 + $0x18] sm:$0xff]
    %v144 = vld [vmem:[%s1 + $0x20] sm:$0xff]
    %v145 = vld [vmem:[%s1 + $0x28] sm:$0xff]
    %v146 = vld [vmem:[%s1 + $0x30] sm:$0xff]
    %v147 = vld [vmem:[%s1 + $0x38] sm:$0xff]
    %v148 = vld [vmem:[%s1 + $0x40] sm:$0xff]
    %v149 = vld [vmem:[%s1 + $0x48] sm:$0xff]
    %v150 = vld [vmem:[%s1 + $0x50] sm:$0xff]
    %v151 = vld [vmem:[%s1 + $0x58] sm:$0xff]
    %v152 = vld [vmem:[%s1 + $0x60] sm:$0xff]
    %v153 = vld [vmem:[%s1 + $0x68] sm:$0xff]
    %v154 = vld [vmem:[%s1 + $0x70] sm:$0xff]
    %v155 = vld [vmem:[%s1 + $0x78] sm:$0xff]
    %v156 = vpack.c.bf16 %v141, %v140
    %v157 = vpack.c.bf16 %v143, %v142
    %v158 = vpack.c.bf16 %v145, %v144
    %v159 = vpack.c.bf16 %v147, %v146
    %v160 = vpack.c.bf16 %v149, %v148
    %v161 = vpack.c.bf16 %v151, %v150
    %v162 = vpack.c.bf16 %v153, %v152
    %v163 = vpack.c.bf16 %v155, %v154
    %v164 = vld [vmem:[#allocation3] sm:$0xf]
    %v165 = vld [vmem:[#allocation3 + $0x4] sm:$0xf]
    %v166 = vld [vmem:[#allocation3 + $0x8] sm:$0xf]
    %v167 = vld [vmem:[#allocation3 + $0xc] sm:$0xf]
    %v168 = vld [vmem:[#allocation3 + $0x10] sm:$0xf]
    %v169 = vld [vmem:[#allocation3 + $0x14] sm:$0xf]
    %v170 = vld [vmem:[#allocation3 + $0x18] sm:$0xf]
    %v171 = vld [vmem:[#allocation3 + $0x1c] sm:$0xf]
    %v172 = vld [vmem:[#allocation3 + $0x20] sm:$0xf]
    %v173 = vld [vmem:[#allocation3 + $0x24] sm:$0xf]
    %v174 = vld [vmem:[#allocation3 + $0x28] sm:$0xf]
    %v175 = vld [vmem:[#allocation3 + $0x2c] sm:$0xf]
    %v176 = vld [vmem:[#allocation3 + $0x30] sm:$0xf]
    %v177 = vld [vmem:[#allocation3 + $0x34] sm:$0xf]
    %v178 = vld [vmem:[#allocation3 + $0x38] sm:$0xf]
    %v179 = vld [vmem:[#allocation3 + $0x3c] sm:$0xf]
    %v196 = vunpack.c.l.b16 %v164
    %v197 = vunpack.c.l.b16 %v165
    %v198 = vunpack.c.l.b16 %v166
    %v199 = vunpack.c.l.b16 %v167
    %v200 = vunpack.c.l.b16 %v168
    %v201 = vunpack.c.l.b16 %v169
    %v202 = vunpack.c.l.b16 %v170
    %v203 = vunpack.c.l.b16 %v171
    %v204 = vunpack.c.l.b16 %v172
    %v205 = vunpack.c.l.b16 %v173
    %v206 = vunpack.c.l.b16 %v174
    %v207 = vunpack.c.l.b16 %v175
    %v208 = vunpack.c.l.b16 %v176
    %v209 = vunpack.c.l.b16 %v177
    %v210 = vunpack.c.l.b16 %v178
    %v211 = vunpack.c.l.b16 %v179
    %v212 = vpack.c.b16 %v197, %v196
    %v213 = vpack.c.b16 %v199, %v198
    %v214 = vpack.c.b16 %v201, %v200
    %v215 = vpack.c.b16 %v203, %v202
    %v216 = vpack.c.b16 %v205, %v204
    %v217 = vpack.c.b16 %v207, %v206
    %v218 = vpack.c.b16 %v209, %v208
    %v219 = vpack.c.b16 %v211, %v210
    %228 = vmatprep.subr.bf16.mxu0 0
    %229 = vmatpush1.bf16.msra.mxu0 %v212
    %230 = vmatprep.subr.bf16.mxu0 0
    %231 = vmatpush1.bf16.msra.mxu0 %v213
    %232 = vmatprep.subr.bf16.mxu0 0
    %233 = vmatpush1.bf16.msra.mxu0 %v214
    %234 = vmatprep.subr.bf16.mxu0 0
    %235 = vmatpush1.bf16.msra.mxu0 %v215
    %236 = vmatprep.subr.bf16.mxu0 0
    %237 = vmatpush1.bf16.msra.mxu0 %v216
    %238 = vmatprep.subr.bf16.mxu0 0
    %239 = vmatpush1.bf16.msra.mxu0 %v217
    %240 = vmatprep.subr.bf16.mxu0 0
    %241 = vmatpush1.bf16.msra.mxu0 %v218
    %242 = vmatprep.subr.bf16.mxu0 0
    %243 = vmatpush1.bf16.msra.mxu0 %v219
    %244 = vmatprep.subr.bf16.mxu0 0
    %245 = vmatpush1.bf16.msra.mxu0 0
    %246 = vmatprep.subr.bf16.mxu0 0
    %247 = vmatpush1.bf16.msra.mxu0 0
    %248 = vmatprep.subr.bf16.mxu0 0
    %249 = vmatpush1.bf16.msra.mxu0 0
    %250 = vmatprep.subr.bf16.mxu0 0
    %251 = vmatpush1.bf16.msra.mxu0 0
    %252 = vmatprep.subr.bf16.mxu0 0
    %253 = vmatpush1.bf16.msra.mxu0 0
    %254 = vmatprep.subr.bf16.mxu0 0
    %255 = vmatpush1.bf16.msra.mxu0 0
    %256 = vmatprep.subr.bf16.mxu0 0
    %257 = vmatpush1.bf16.msra.mxu0 0
    %258 = vmatprep.subr.bf16.mxu0 0
    %259 = vmatpush1.bf16.msra.mxu0 0
    %260 = vmatprep.mubr.bf16.mxu0 0
    %261 = vmatmul.mubr.bf16.gmra.mrb[0].mxu0 %v156
    %v262 = vpop.f32.mrb[0].mxu0
    %v263 = vadd.f32 0.0, %v262
    %v264 = vpop.f32.mrb[0].mxu0
    %v265 = vpop.f32.mrb[0].mxu0
    %v266 = vadd.f32 0.0, %v265
    %v267 = vpop.f32.mrb[0].mxu0
    %268 = vmatprep.mubr.bf16.mxu0 0
    %269 = vmatmul.mubr.bf16.gmra.mrb[0].mxu0 %v157
    %v270 = vpop.f32.mrb[0].mxu0
    %v271 = vadd.f32 0.0, %v270
    %v272 = vpop.f32.mrb[0].mxu0
    %v273 = vpop.f32.mrb[0].mxu0
    %v274 = vadd.f32 0.0, %v273
    %v275 = vpop.f32.mrb[0].mxu0
    %276 = vmatprep.mubr.bf16.mxu0 0
    %277 = vmatmul.mubr.bf16.gmra.mrb[0].mxu0 %v158
    %v278 = vpop.f32.mrb[0].mxu0
    %v279 = vadd.f32 0.0, %v278
    %v280 = vpop.f32.mrb[0].mxu0
    %v281 = vpop.f32.mrb[0].mxu0
    %v282 = vadd.f32 0.0, %v281
    %v283 = vpop.f32.mrb[0].mxu0
    %284 = vmatprep.mubr.bf16.mxu0 0
    %285 = vmatmul.mubr.bf16.gmra.mrb[0].mxu0 %v159
    %v286 = vpop.f32.mrb[0].mxu0
    %v287 = vadd.f32 0.0, %v286
    %v288 = vpop.f32.mrb[0].mxu0
    %v289 = vpop.f32.mrb[0].mxu0
    %v290 = vadd.f32 0.0, %v289
    %v291 = vpop.f32.mrb[0].mxu0
    %292 = vmatprep.mubr.bf16.mxu0 0
    %293 = vmatmul.mubr.bf16.gmra.mrb[0].mxu0 %v160
    %v294 = vpop.f32.mrb[0].mxu0
    %v295 = vadd.f32 0.0, %v294
    %v296 = vpop.f32.mrb[0].mxu0
    %v297 = vpop.f32.mrb[0].mxu0
    %v298 = vadd.f32 0.0, %v297
    %v299 = vpop.f32.mrb[0].mxu0
    %300 = vmatprep.mubr.bf16.mxu0 0
    %301 = vmatmul.mubr.bf16.gmra.mrb[0].mxu0 %v161
    %v302 = vpop.f32.mrb[0].mxu0
    %v303 = vadd.f32 0.0, %v302
    %v304 = vpop.f32.mrb[0].mxu0
    %v305 = vpop.f32.mrb[0].mxu0
    %v306 = vadd.f32 0.0, %v305
    %v307 = vpop.f32.mrb[0].mxu0
    %308 = vmatprep.mubr.bf16.mxu0 0
    %309 = vmatmul.mubr.bf16.gmra.mrb[0].mxu0 %v162
    %v310 = vpop.f32.mrb[0].mxu0
    %v311 = vadd.f32 0.0, %v310
    %v312 = vpop.f32.mrb[0].mxu0
    %v313 = vpop.f32.mrb[0].mxu0
    %v314 = vadd.f32 0.0, %v313
    %v315 = vpop.f32.mrb[0].mxu0
    %316 = vmatprep.mubr.bf16.mxu0 0
    %317 = vmatmul.mubr.bf16.gmra.mrb[0].mxu0 %v163
    %v318 = vpop.f32.mrb[0].mxu0
    %v319 = vadd.f32 0.0, %v318
    %v320 = vpop.f32.mrb[0].mxu0
    %v321 = vpop.f32.mrb[0].mxu0
    %v322 = vadd.f32 0.0, %v321
    %v323 = vpop.f32.mrb[0].mxu0
    %324 = vdwg.mxu0
    %v325 = vld [vmem:[%s3] sm:$0xff]
    %v326 = vld [vmem:[%s3 + $0x8] sm:$0xff]
    %v327 = vld [vmem:[%s3 + $0x10] sm:$0xff]
    %v328 = vld [vmem:[%s3 + $0x18] sm:$0xff]
    %v329 = vld [vmem:[%s3 + $0x20] sm:$0xff]
    %v330 = vld [vmem:[%s3 + $0x28] sm:$0xff]
    %v331 = vld [vmem:[%s3 + $0x30] sm:$0xff]
    %v332 = vld [vmem:[%s3 + $0x38] sm:$0xff]
    %v333 = vld [vmem:[%s3 + $0x40] sm:$0xff]
    %v334 = vld [vmem:[%s3 + $0x48] sm:$0xff]
    %v335 = vld [vmem:[%s3 + $0x50] sm:$0xff]
    %v336 = vld [vmem:[%s3 + $0x58] sm:$0xff]
    %v337 = vld [vmem:[%s3 + $0x60] sm:$0xff]
    %v338 = vld [vmem:[%s3 + $0x68] sm:$0xff]
    %v339 = vld [vmem:[%s3 + $0x70] sm:$0xff]
    %v340 = vld [vmem:[%s3 + $0x78] sm:$0xff]
    %v341 = vlaneseq
    %v342 = vand.u32 %v341, 127
    %343 = vset.pattern.permute.xlu0 0
    %344 = vperm.xlu0 %343, %v325
    %v345 = vpop.permute.xlu0 %344
    %346 = vset.pattern.permute.xlu0 0
    %347 = vperm.xlu0 %346, %v326
    %v348 = vpop.permute.xlu0 %347
    %349 = vset.pattern.permute.xlu0 0
    %350 = vperm.xlu0 %349, %v327
    %v351 = vpop.permute.xlu0 %350
    %352 = vset.pattern.permute.xlu0 0
    %353 = vperm.xlu0 %352, %v328
    %v354 = vpop.permute.xlu0 %353
    %355 = vset.pattern.permute.xlu0 0
    %356 = vperm.xlu0 %355, %v329
    %v357 = vpop.permute.xlu0 %356
    %358 = vset.pattern.permute.xlu0 0
    %359 = vperm.xlu0 %358, %v330
    %v360 = vpop.permute.xlu0 %359
    %361 = vset.pattern.permute.xlu0 0
    %362 = vperm.xlu0 %361, %v331
    %v363 = vpop.permute.xlu0 %362
    %364 = vset.pattern.permute.xlu0 0
    %365 = vperm.xlu0 %364, %v332
    %v366 = vpop.permute.xlu0 %365
    %367 = vset.pattern.permute.xlu0 0
    %368 = vperm.xlu0 %367, %v333
    %v369 = vpop.permute.xlu0 %368
    %370 = vset.pattern.permute.xlu0 0
    %371 = vperm.xlu0 %370, %v334
    %v372 = vpop.permute.xlu0 %371
    %373 = vset.pattern.permute.xlu0 0
    %374 = vperm.xlu0 %373, %v335
    %v375 = vpop.permute.xlu0 %374
    %376 = vset.pattern.permute.xlu0 0
    %377 = vperm.xlu0 %376, %v336
    %v378 = vpop.permute.xlu0 %377
    %379 = vset.pattern.permute.xlu0 0
    %380 = vperm.xlu0 %379, %v337
    %v381 = vpop.permute.xlu0 %380
    %382 = vset.pattern.permute.xlu0 0
    %383 = vperm.xlu0 %382, %v338
    %v384 = vpop.permute.xlu0 %383
    %385 = vset.pattern.permute.xlu0 0
    %386 = vperm.xlu0 %385, %v339
    %v387 = vpop.permute.xlu0 %386
    %388 = vset.pattern.permute.xlu0 0
    %389 = vperm.xlu0 %388, %v340
    %v390 = vpop.permute.xlu0 %389
    %vm391 = vcmp.eq.s32.totalorder %v345, %v342
    %vm392 = vcmp.eq.s32.totalorder %v348, %v342
    %vm393 = vcmp.eq.s32.totalorder %v351, %v342
    %vm394 = vcmp.eq.s32.totalorder %v354, %v342
    %vm395 = vcmp.eq.s32.totalorder %v357, %v342
    %vm396 = vcmp.eq.s32.totalorder %v360, %v342
    %vm397 = vcmp.eq.s32.totalorder %v363, %v342
    %vm398 = vcmp.eq.s32.totalorder %v366, %v342
    %vm399 = vcmp.eq.s32.totalorder %v369, %v342
    %vm400 = vcmp.eq.s32.totalorder %v372, %v342
    %vm401 = vcmp.eq.s32.totalorder %v375, %v342
    %vm402 = vcmp.eq.s32.totalorder %v378, %v342
    %vm403 = vcmp.eq.s32.totalorder %v381, %v342
    %vm404 = vcmp.eq.s32.totalorder %v384, %v342
    %vm405 = vcmp.eq.s32.totalorder %v387, %v342
    %vm406 = vcmp.eq.s32.totalorder %v390, %v342
    %v407 = vsel %vm391, 1, 0
    %v408 = vsel %vm392, 1, 0
    %v409 = vsel %vm393, 1, 0
    %v410 = vsel %vm394, 1, 0
    %v411 = vsel %vm395, 1, 0
    %v412 = vsel %vm396, 1, 0
    %v413 = vsel %vm397, 1, 0
    %v414 = vsel %vm398, 1, 0
    %v415 = vsel %vm399, 1, 0
    %v416 = vsel %vm400, 1, 0
    %v417 = vsel %vm401, 1, 0
    %v418 = vsel %vm402, 1, 0
    %v419 = vsel %vm403, 1, 0
    %v420 = vsel %vm404, 1, 0
    %v421 = vsel %vm405, 1, 0
    %v422 = vsel %vm406, 1, 0
    %v423 = vcvt.s32.f32 %v407
    %v424 = vcvt.s32.f32 %v408
    %v425 = vcvt.s32.f32 %v409
    %v426 = vcvt.s32.f32 %v410
    %v427 = vcvt.s32.f32 %v411
    %v428 = vcvt.s32.f32 %v412
    %v429 = vcvt.s32.f32 %v413
    %v430 = vcvt.s32.f32 %v414
    %v431 = vcvt.s32.f32 %v415
    %v432 = vcvt.s32.f32 %v416
    %v433 = vcvt.s32.f32 %v417
    %v434 = vcvt.s32.f32 %v418
    %v435 = vcvt.s32.f32 %v419
    %v436 = vcvt.s32.f32 %v420
    %v437 = vcvt.s32.f32 %v421
    %v438 = vcvt.s32.f32 %v422
    %v439 = vpack.c.bf16 %v424, %v423
    %v440 = vpack.c.bf16 %v426, %v425
    %v441 = vpack.c.bf16 %v428, %v427
    %v442 = vpack.c.bf16 %v430, %v429
    %v443 = vpack.c.bf16 %v432, %v431
    %v444 = vpack.c.bf16 %v434, %v433
    %v445 = vpack.c.bf16 %v436, %v435
    %v446 = vpack.c.bf16 %v438, %v437
    %v447 = vld [vmem:[%s0] sm:$0xff]
    %v448 = vld [vmem:[%s0 + $0x8] sm:$0xff]
    %v449 = vld [vmem:[%s0 + $0x10] sm:$0xff]
    %v450 = vld [vmem:[%s0 + $0x18] sm:$0xff]
    %v451 = vld [vmem:[%s0 + $0x20] sm:$0xff]
    %v452 = vld [vmem:[%s0 + $0x28] sm:$0xff]
    %v453 = vld [vmem:[%s0 + $0x30] sm:$0xff]
    %v454 = vld [vmem:[%s0 + $0x38] sm:$0xff]
    %v455 = vld [vmem:[%s0 + $0x40] sm:$0xff]
    %v456 = vld [vmem:[%s0 + $0x48] sm:$0xff]
    %v457 = vld [vmem:[%s0 + $0x50] sm:$0xff]
    %v458 = vld [vmem:[%s0 + $0x58] sm:$0xff]
    %v459 = vld [vmem:[%s0 + $0x60] sm:$0xff]
    %v460 = vld [vmem:[%s0 + $0x68] sm:$0xff]
    %v461 = vld [vmem:[%s0 + $0x70] sm:$0xff]
    %v462 = vld [vmem:[%s0 + $0x78] sm:$0xff]
    %v463 = vpack.c.bf16 %v448, %v447
    %v464 = vpack.c.bf16 %v450, %v449
    %v465 = vpack.c.bf16 %v452, %v451
    %v466 = vpack.c.bf16 %v454, %v453
    %v467 = vpack.c.bf16 %v456, %v455
    %v468 = vpack.c.bf16 %v458, %v457
    %v469 = vpack.c.bf16 %v460, %v459
    %v470 = vpack.c.bf16 %v462, %v461
    %471 = vmatprep.subr.bf16.mxu0 0
    %472 = vmatpush1.bf16.msra.mxu0 %v463
    %473 = vmatprep.subr.bf16.mxu0 0
    %474 = vmatpush1.bf16.msra.mxu0 %v464
    %475 = vmatprep.subr.bf16.mxu0 0
    %476 = vmatpush1.bf16.msra.mxu0 %v465
    %477 = vmatprep.subr.bf16.mxu0 0
    %478 = vmatpush1.bf16.msra.mxu0 %v466
    %479 = vmatprep.subr.bf16.mxu0 0
    %480 = vmatpush1.bf16.msra.mxu0 %v467
    %481 = vmatprep.subr.bf16.mxu0 0
    %482 = vmatpush1.bf16.msra.mxu0 %v468
    %483 = vmatprep.subr.bf16.mxu0 0
    %484 = vmatpush1.bf16.msra.mxu0 %v469
    %485 = vmatprep.subr.bf16.mxu0 0
    %486 = vmatpush1.bf16.msra.mxu0 %v470
    %487 = vmatprep.subr.bf16.mxu0 0
    %488 = vmatpush1.bf16.msra.mxu0 0
    %489 = vmatprep.subr.bf16.mxu0 0
    %490 = vmatpush1.bf16.msra.mxu0 0
    %491 = vmatprep.subr.bf16.mxu0 0
    %492 = vmatpush1.bf16.msra.mxu0 0
    %493 = vmatprep.subr.bf16.mxu0 0
    %494 = vmatpush1.bf16.msra.mxu0 0
    %495 = vmatprep.subr.bf16.mxu0 0
    %496 = vmatpush1.bf16.msra.mxu0 0
    %497 = vmatprep.subr.bf16.mxu0 0
    %498 = vmatpush1.bf16.msra.mxu0 0
    %499 = vmatprep.subr.bf16.mxu0 0
    %500 = vmatpush1.bf16.msra.mxu0 0
    %501 = vmatprep.subr.bf16.mxu0 0
    %502 = vmatpush1.bf16.msra.mxu0 0
    %503 = vmatprep.mubr.bf16.mxu0 0
    %504 = vmatmul.mubr.bf16.gmra.mrb[0].mxu0 %v439
    %v505 = vpop.f32.mrb[0].mxu0
    %v506 = vadd.f32 %v263, %v505
    %v507 = vpop.f32.mrb[0].mxu0
    %v508 = vpop.f32.mrb[0].mxu0
    %v509 = vadd.f32 %v266, %v508
    %v510 = vpop.f32.mrb[0].mxu0
    %511 = vmatprep.mubr.bf16.mxu0 0
    %512 = vmatmul.mubr.bf16.gmra.mrb[0].mxu0 %v440
    %v513 = vpop.f32.mrb[0].mxu0
    %v514 = vadd.f32 %v271, %v513
    %v515 = vpop.f32.mrb[0].mxu0
    %v516 = vpop.f32.mrb[0].mxu0
    %v517 = vadd.f32 %v274, %v516
    %v518 = vpop.f32.mrb[0].mxu0
    %519 = vmatprep.mubr.bf16.mxu0 0
    %520 = vmatmul.mubr.bf16.gmra.mrb[0].mxu0 %v441
    %v521 = vpop.f32.mrb[0].mxu0
    %v522 = vadd.f32 %v279, %v521
    %v523 = vpop.f32.mrb[0].mxu0
    %v524 = vpop.f32.mrb[0].mxu0
    %v525 = vadd.f32 %v282, %v524
    %v526 = vpop.f32.mrb[0].mxu0
    %527 = vmatprep.mubr.bf16.mxu0 0
    %528 = vmatmul.mubr.bf16.gmra.mrb[0].mxu0 %v442
    %v529 = vpop.f32.mrb[0].mxu0
    %v530 = vadd.f32 %v287, %v529
    %v531 = vpop.f32.mrb[0].mxu0
    %v532 = vpop.f32.mrb[0].mxu0
    %v533 = vadd.f32 %v290, %v532
    %v534 = vpop.f32.mrb[0].mxu0
    %535 = vmatprep.mubr.bf16.mxu0 0
    %536 = vmatmul.mubr.bf16.gmra.mrb[0].mxu0 %v443
    %v537 = vpop.f32.mrb[0].mxu0
    %v538 = vadd.f32 %v295, %v537
    %v539 = vpop.f32.mrb[0].mxu0
    %v540 = vpop.f32.mrb[0].mxu0
    %v541 = vadd.f32 %v298, %v540
    %v542 = vpop.f32.mrb[0].mxu0
    %543 = vmatprep.mubr.bf16.mxu0 0
    %544 = vmatmul.mubr.bf16.gmra.mrb[0].mxu0 %v444
    %v545 = vpop.f32.mrb[0].mxu0
    %v546 = vadd.f32 %v303, %v545
    %v547 = vpop.f32.mrb[0].mxu0
    %v548 = vpop.f32.mrb[0].mxu0
    %v549 = vadd.f32 %v306, %v548
    %v550 = vpop.f32.mrb[0].mxu0
    %551 = vmatprep.mubr.bf16.mxu0 0
    %552 = vmatmul.mubr.bf16.gmra.mrb[0].mxu0 %v445
    %v553 = vpop.f32.mrb[0].mxu0
    %v554 = vadd.f32 %v311, %v553
    %v555 = vpop.f32.mrb[0].mxu0
    %v556 = vpop.f32.mrb[0].mxu0
    %v557 = vadd.f32 %v314, %v556
    %v558 = vpop.f32.mrb[0].mxu0
    %559 = vmatprep.mubr.bf16.mxu0 0
    %560 = vmatmul.mubr.bf16.gmra.mrb[0].mxu0 %v446
    %v561 = vpop.f32.mrb[0].mxu0
    %v562 = vadd.f32 %v319, %v561
    %v563 = vpop.f32.mrb[0].mxu0
    %v564 = vpop.f32.mrb[0].mxu0
    %v565 = vadd.f32 %v322, %v564
    %v566 = vpop.f32.mrb[0].mxu0
    %567 = vdwg.mxu0
    %v568 = vld [vmem:[%s5] sm:$0xff]
    %v569 = vld [vmem:[%s5 + $0x8] sm:$0xff]
    %v570 = vld [vmem:[%s5 + $0x10] sm:$0xff]
    %v571 = vld [vmem:[%s5 + $0x18] sm:$0xff]
    %v572 = vld [vmem:[%s5 + $0x20] sm:$0xff]
    %v573 = vld [vmem:[%s5 + $0x28] sm:$0xff]
    %v574 = vld [vmem:[%s5 + $0x30] sm:$0xff]
    %v575 = vld [vmem:[%s5 + $0x38] sm:$0xff]
    %v576 = vld [vmem:[%s5 + $0x40] sm:$0xff]
    %v577 = vld [vmem:[%s5 + $0x48] sm:$0xff]
    %v578 = vld [vmem:[%s5 + $0x50] sm:$0xff]
    %v579 = vld [vmem:[%s5 + $0x58] sm:$0xff]
    %v580 = vld [vmem:[%s5 + $0x60] sm:$0xff]
    %v581 = vld [vmem:[%s5 + $0x68] sm:$0xff]
    %v582 = vld [vmem:[%s5 + $0x70] sm:$0xff]
    %v583 = vld [vmem:[%s5 + $0x78] sm:$0xff]
    %585 = vset.pattern.permute.xlu0 0
    %586 = vperm.xlu0 %585, %v568
    %v587 = vpop.permute.xlu0 %586
    %590 = vset.pattern.permute.xlu0 0
    %591 = vperm.xlu0 %590, %v569
    %v592 = vpop.permute.xlu0 %591
    %595 = vset.pattern.permute.xlu0 0
    %596 = vperm.xlu0 %595, %v570
    %v597 = vpop.permute.xlu0 %596
    %600 = vset.pattern.permute.xlu0 0
    %601 = vperm.xlu0 %600, %v571
    %v602 = vpop.permute.xlu0 %601
    %605 = vset.pattern.permute.xlu0 0
    %606 = vperm.xlu0 %605, %v572
    %v607 = vpop.permute.xlu0 %606
    %610 = vset.pattern.permute.xlu0 0
    %611 = vperm.xlu0 %610, %v573
    %v612 = vpop.permute.xlu0 %611
    %615 = vset.pattern.permute.xlu0 0
    %616 = vperm.xlu0 %615, %v574
    %v617 = vpop.permute.xlu0 %616
    %620 = vset.pattern.permute.xlu0 0
    %621 = vperm.xlu0 %620, %v575
    %v622 = vpop.permute.xlu0 %621
    %625 = vset.pattern.permute.xlu0 0
    %626 = vperm.xlu0 %625, %v576
    %v627 = vpop.permute.xlu0 %626
    %630 = vset.pattern.permute.xlu0 0
    %631 = vperm.xlu0 %630, %v577
    %v632 = vpop.permute.xlu0 %631
    %635 = vset.pattern.permute.xlu0 0
    %636 = vperm.xlu0 %635, %v578
    %v637 = vpop.permute.xlu0 %636
    %640 = vset.pattern.permute.xlu0 0
    %641 = vperm.xlu0 %640, %v579
    %v642 = vpop.permute.xlu0 %641
    %645 = vset.pattern.permute.xlu0 0
    %646 = vperm.xlu0 %645, %v580
    %v647 = vpop.permute.xlu0 %646
    %650 = vset.pattern.permute.xlu0 0
    %651 = vperm.xlu0 %650, %v581
    %v652 = vpop.permute.xlu0 %651
    %655 = vset.pattern.permute.xlu0 0
    %656 = vperm.xlu0 %655, %v582
    %v657 = vpop.permute.xlu0 %656
    %660 = vset.pattern.permute.xlu0 0
    %661 = vperm.xlu0 %660, %v583
    %v662 = vpop.permute.xlu0 %661
    %v664 = vmul.f32 %v506, %v587
    %v665 = vmul.f32 %v509, %v592
    %v666 = vmul.f32 %v514, %v597
    %v667 = vmul.f32 %v517, %v602
    %v668 = vmul.f32 %v522, %v607
    %v669 = vmul.f32 %v525, %v612
    %v670 = vmul.f32 %v530, %v617
    %v671 = vmul.f32 %v533, %v622
    %v672 = vmul.f32 %v538, %v627
    %v673 = vmul.f32 %v541, %v632
    %v674 = vmul.f32 %v546, %v637
    %v675 = vmul.f32 %v549, %v642
    %v676 = vmul.f32 %v554, %v647
    %v677 = vmul.f32 %v557, %v652
    %v678 = vmul.f32 %v562, %v657
    %v679 = vmul.f32 %v565, %v662
    %v680 = vld [vmem:[%s4] sm:$0x1]
    %v681 = vlaneseq
    %v682 = vshrl.u32 %v681, 7
    %v683 = vadd.s32 %v682, 8
    %v684 = vadd.s32 %v682, 16
    %v685 = vadd.s32 %v682, 24
    %v686 = vadd.s32 %v682, 32
    %v687 = vadd.s32 %v682, 40
    %v688 = vadd.s32 %v682, 48
    %v689 = vadd.s32 %v682, 56
    %v690 = vadd.s32 %v682, 64
    %v691 = vadd.s32 %v682, 72
    %v692 = vadd.s32 %v682, 80
    %v693 = vadd.s32 %v682, 88
    %v694 = vadd.s32 %v682, 96
    %v695 = vadd.s32 %v682, 104
    %v696 = vadd.s32 %v682, 112
    %v697 = vadd.s32 %v682, 120
    %v698 = vlaneseq
    %v699 = vshrl.u32 %v698, 7
    %v700 = vsub.s32 0, %v699
    %v701 = vrot.slane %v680, %v700
    %vm702 = vcmp.eq.s32.totalorder %v701, %v682
    %vm703 = vcmp.eq.s32.totalorder %v701, %v683
    %vm704 = vcmp.eq.s32.totalorder %v701, %v684
    %vm705 = vcmp.eq.s32.totalorder %v701, %v685
    %vm706 = vcmp.eq.s32.totalorder %v701, %v686
    %vm707 = vcmp.eq.s32.totalorder %v701, %v687
    %vm708 = vcmp.eq.s32.totalorder %v701, %v688
    %vm709 = vcmp.eq.s32.totalorder %v701, %v689
    %vm710 = vcmp.eq.s32.totalorder %v701, %v690
    %vm711 = vcmp.eq.s32.totalorder %v701, %v691
    %vm712 = vcmp.eq.s32.totalorder %v701, %v692
    %vm713 = vcmp.eq.s32.totalorder %v701, %v693
    %vm714 = vcmp.eq.s32.totalorder %v701, %v694
    %vm715 = vcmp.eq.s32.totalorder %v701, %v695
    %vm716 = vcmp.eq.s32.totalorder %v701, %v696
    %vm717 = vcmp.eq.s32.totalorder %v701, %v697
    %v718 = vsel %vm702, 1, 0
    %v719 = vsel %vm703, 1, 0
    %v720 = vsel %vm704, 1, 0
    %v721 = vsel %vm705, 1, 0
    %v722 = vsel %vm706, 1, 0
    %v723 = vsel %vm707, 1, 0
    %v724 = vsel %vm708, 1, 0
    %v725 = vsel %vm709, 1, 0
    %v726 = vsel %vm710, 1, 0
    %v727 = vsel %vm711, 1, 0
    %v728 = vsel %vm712, 1, 0
    %v729 = vsel %vm713, 1, 0
    %v730 = vsel %vm714, 1, 0
    %v731 = vsel %vm715, 1, 0
    %v732 = vsel %vm716, 1, 0
    %v733 = vsel %vm717, 1, 0
    %v734 = vcvt.s32.f32 %v718
    %v735 = vcvt.s32.f32 %v719
    %v736 = vcvt.s32.f32 %v720
    %v737 = vcvt.s32.f32 %v721
    %v738 = vcvt.s32.f32 %v722
    %v739 = vcvt.s32.f32 %v723
    %v740 = vcvt.s32.f32 %v724
    %v741 = vcvt.s32.f32 %v725
    %v742 = vcvt.s32.f32 %v726
    %v743 = vcvt.s32.f32 %v727
    %v744 = vcvt.s32.f32 %v728
    %v745 = vcvt.s32.f32 %v729
    %v746 = vcvt.s32.f32 %v730
    %v747 = vcvt.s32.f32 %v731
    %v748 = vcvt.s32.f32 %v732
    %v749 = vcvt.s32.f32 %v733
    %v750 = vpack.c.bf16 %v735, %v734
    %v751 = vpack.c.bf16 %v737, %v736
    %v752 = vpack.c.bf16 %v739, %v738
    %v753 = vpack.c.bf16 %v741, %v740
    %v754 = vpack.c.bf16 %v743, %v742
    %v755 = vpack.c.bf16 %v745, %v744
    %v756 = vpack.c.bf16 %v747, %v746
    %v757 = vpack.c.bf16 %v749, %v748
    %v758 = vld [vmem:[#allocation2] sm:$0xff]
    %v759 = vld [vmem:[#allocation2 + $0x8] sm:$0xff]
    %v760 = vld [vmem:[#allocation2 + $0x10] sm:$0xff]
    %v761 = vld [vmem:[#allocation2 + $0x18] sm:$0xff]
    %v762 = vld [vmem:[#allocation2 + $0x20] sm:$0xff]
    %v763 = vld [vmem:[#allocation2 + $0x28] sm:$0xff]
    %v764 = vld [vmem:[#allocation2 + $0x30] sm:$0xff]
    %v765 = vld [vmem:[#allocation2 + $0x38] sm:$0xff]
    %v766 = vld [vmem:[#allocation2 + $0x40] sm:$0xff]
    %v767 = vld [vmem:[#allocation2 + $0x48] sm:$0xff]
    %v768 = vld [vmem:[#allocation2 + $0x50] sm:$0xff]
    %v769 = vld [vmem:[#allocation2 + $0x58] sm:$0xff]
    %v770 = vld [vmem:[#allocation2 + $0x60] sm:$0xff]
    %v771 = vld [vmem:[#allocation2 + $0x68] sm:$0xff]
    %v772 = vld [vmem:[#allocation2 + $0x70] sm:$0xff]
    %v773 = vld [vmem:[#allocation2 + $0x78] sm:$0xff]
    %v774 = vpack.c.bf16 %v665, %v664
    %v775 = vpack.c.bf16 %v667, %v666
    %v776 = vpack.c.bf16 %v669, %v668
    %v777 = vpack.c.bf16 %v671, %v670
    %v778 = vpack.c.bf16 %v673, %v672
    %v779 = vpack.c.bf16 %v675, %v674
    %v780 = vpack.c.bf16 %v677, %v676
    %v781 = vpack.c.bf16 %v679, %v678
    %782 = vmatprep.subr.bf16.mxu0 0
    %783 = vmatpush1.bf16.msra.mxu0 %v774
    %784 = vmatprep.subr.bf16.mxu0 0
    %785 = vmatpush1.bf16.msra.mxu0 %v775
    %786 = vmatprep.subr.bf16.mxu0 0
    %787 = vmatpush1.bf16.msra.mxu0 %v776
    %788 = vmatprep.subr.bf16.mxu0 0
    %789 = vmatpush1.bf16.msra.mxu0 %v777
    %790 = vmatprep.subr.bf16.mxu0 0
    %791 = vmatpush1.bf16.msra.mxu0 %v778
    %792 = vmatprep.subr.bf16.mxu0 0
    %793 = vmatpush1.bf16.msra.mxu0 %v779
    %794 = vmatprep.subr.bf16.mxu0 0
    %795 = vmatpush1.bf16.msra.mxu0 %v780
    %796 = vmatprep.subr.bf16.mxu0 0
    %797 = vmatpush1.bf16.msra.mxu0 %v781
    %798 = vmatprep.subr.bf16.mxu0 0
    %799 = vmatpush1.bf16.msra.mxu0 0
    %800 = vmatprep.subr.bf16.mxu0 0
    %801 = vmatpush1.bf16.msra.mxu0 0
    %802 = vmatprep.subr.bf16.mxu0 0
    %803 = vmatpush1.bf16.msra.mxu0 0
    %804 = vmatprep.subr.bf16.mxu0 0
    %805 = vmatpush1.bf16.msra.mxu0 0
    %806 = vmatprep.subr.bf16.mxu0 0
    %807 = vmatpush1.bf16.msra.mxu0 0
    %808 = vmatprep.subr.bf16.mxu0 0
    %809 = vmatpush1.bf16.msra.mxu0 0
    %810 = vmatprep.subr.bf16.mxu0 0
    %811 = vmatpush1.bf16.msra.mxu0 0
    %812 = vmatprep.subr.bf16.mxu0 0
    %813 = vmatpush1.bf16.msra.mxu0 0
    %814 = vmatprep.mubr.bf16.mxu0 0
    %815 = vmatmul.mubr.bf16.gmra.mrb[0].mxu0 %v750
    %v816 = vpop.f32.mrb[0].mxu0
    %v817 = vadd.f32 0.0, %v816
    %v818 = vpop.f32.mrb[0].mxu0
    %v819 = vpop.f32.mrb[0].mxu0
    %v820 = vadd.f32 0.0, %v819
    %v821 = vpop.f32.mrb[0].mxu0
    %822 = vmatprep.mubr.bf16.mxu0 0
    %823 = vmatmul.mubr.bf16.gmra.mrb[0].mxu0 %v751
    %v824 = vpop.f32.mrb[0].mxu0
    %v825 = vadd.f32 0.0, %v824
    %v826 = vpop.f32.mrb[0].mxu0
    %v827 = vpop.f32.mrb[0].mxu0
    %v828 = vadd.f32 0.0, %v827
    %v829 = vpop.f32.mrb[0].mxu0
    %830 = vmatprep.mubr.bf16.mxu0 0
    %831 = vmatmul.mubr.bf16.gmra.mrb[0].mxu0 %v752
    %v832 = vpop.f32.mrb[0].mxu0
    %v833 = vadd.f32 0.0, %v832
    %v834 = vpop.f32.mrb[0].mxu0
    %v835 = vpop.f32.mrb[0].mxu0
    %v836 = vadd.f32 0.0, %v835
    %v837 = vpop.f32.mrb[0].mxu0
    %838 = vmatprep.mubr.bf16.mxu0 0
    %839 = vmatmul.mubr.bf16.gmra.mrb[0].mxu0 %v753
    %v840 = vpop.f32.mrb[0].mxu0
    %v841 = vadd.f32 0.0, %v840
    %v842 = vpop.f32.mrb[0].mxu0
    %v843 = vpop.f32.mrb[0].mxu0
    %v844 = vadd.f32 0.0, %v843
    %v845 = vpop.f32.mrb[0].mxu0
    %846 = vmatprep.mubr.bf16.mxu0 0
    %847 = vmatmul.mubr.bf16.gmra.mrb[0].mxu0 %v754
    %v848 = vpop.f32.mrb[0].mxu0
    %v849 = vadd.f32 0.0, %v848
    %v850 = vpop.f32.mrb[0].mxu0
    %v851 = vpop.f32.mrb[0].mxu0
    %v852 = vadd.f32 0.0, %v851
    %v853 = vpop.f32.mrb[0].mxu0
    %854 = vmatprep.mubr.bf16.mxu0 0
    %855 = vmatmul.mubr.bf16.gmra.mrb[0].mxu0 %v755
    %v856 = vpop.f32.mrb[0].mxu0
    %v857 = vadd.f32 0.0, %v856
    %v858 = vpop.f32.mrb[0].mxu0
    %v859 = vpop.f32.mrb[0].mxu0
    %v860 = vadd.f32 0.0, %v859
    %v861 = vpop.f32.mrb[0].mxu0
    %862 = vmatprep.mubr.bf16.mxu0 0
    %863 = vmatmul.mubr.bf16.gmra.mrb[0].mxu0 %v756
    %v864 = vpop.f32.mrb[0].mxu0
    %v865 = vadd.f32 0.0, %v864
    %v866 = vpop.f32.mrb[0].mxu0
    %v867 = vpop.f32.mrb[0].mxu0
    %v868 = vadd.f32 0.0, %v867
    %v869 = vpop.f32.mrb[0].mxu0
    %870 = vmatprep.mubr.bf16.mxu0 0
    %871 = vmatmul.mubr.bf16.gmra.mrb[0].mxu0 %v757
    %v872 = vpop.f32.mrb[0].mxu0
    %v873 = vadd.f32 0.0, %v872
    %v874 = vpop.f32.mrb[0].mxu0
    %v875 = vpop.f32.mrb[0].mxu0
    %v876 = vadd.f32 0.0, %v875
    %v877 = vpop.f32.mrb[0].mxu0
    %878 = vdwg.mxu0
    %v879 = vadd.f32 %v758, %v817
    %v880 = vadd.f32 %v759, %v820
    %v881 = vadd.f32 %v760, %v825
    %v882 = vadd.f32 %v761, %v828
    %v883 = vadd.f32 %v762, %v833
    %v884 = vadd.f32 %v763, %v836
    %v885 = vadd.f32 %v764, %v841
    %v886 = vadd.f32 %v765, %v844
    %v887 = vadd.f32 %v766, %v849
    %v888 = vadd.f32 %v767, %v852
    %v889 = vadd.f32 %v768, %v857
    %v890 = vadd.f32 %v769, %v860
    %v891 = vadd.f32 %v770, %v865
    %v892 = vadd.f32 %v771, %v868
    %v893 = vadd.f32 %v772, %v873
    %v894 = vadd.f32 %v773, %v876
    %895 = vst [vmem:[#allocation2] sm:$0xff] %v879
    %896 = vst [vmem:[#allocation2 + $0x8] sm:$0xff] %v880
    %897 = vst [vmem:[#allocation2 + $0x10] sm:$0xff] %v881
    %898 = vst [vmem:[#allocation2 + $0x18] sm:$0xff] %v882
    %899 = vst [vmem:[#allocation2 + $0x20] sm:$0xff] %v883
    %900 = vst [vmem:[#allocation2 + $0x28] sm:$0xff] %v884
    %901 = vst [vmem:[#allocation2 + $0x30] sm:$0xff] %v885
    %902 = vst [vmem:[#allocation2 + $0x38] sm:$0xff] %v886
    %903 = vst [vmem:[#allocation2 + $0x40] sm:$0xff] %v887
    %904 = vst [vmem:[#allocation2 + $0x48] sm:$0xff] %v888
    %905 = vst [vmem:[#allocation2 + $0x50] sm:$0xff] %v889
    %906 = vst [vmem:[#allocation2 + $0x58] sm:$0xff] %v890
    %907 = vst [vmem:[#allocation2 + $0x60] sm:$0xff] %v891
    %908 = vst [vmem:[#allocation2 + $0x68] sm:$0xff] %v892
    %909 = vst [vmem:[#allocation2 + $0x70] sm:$0xff] %v893
    %910 = vst [vmem:[#allocation2 + $0x78] sm:$0xff] %v894
    // Predicated region
    $region74: #{tpu_custom_call.1} parent=1 // pred_check
      %p911 = pneg %p104
    $region75: #{tpu_custom_call.1} parent=1 // pred_check_branch
      %913 = sbr.rel (%p911) target = $region77
    $region76: #{tpu_custom_call.1} parent=1 // pred_region
      %v914 = vld [vmem:[#allocation2] sm:$0xff]
      %v915 = vld [vmem:[#allocation2 + $0x8] sm:$0xff]
      %v916 = vld [vmem:[#allocation2 + $0x10] sm:$0xff]
      %v917 = vld [vmem:[#allocation2 + $0x18] sm:$0xff]
      %v918 = vld [vmem:[#allocation2 + $0x20] sm:$0xff]
      %v919 = vld [vmem:[#allocation2 + $0x28] sm:$0xff]
      %v920 = vld [vmem:[#allocation2 + $0x30] sm:$0xff]
      %v921 = vld [vmem:[#allocation2 + $0x38] sm:$0xff]
      %v922 = vld [vmem:[#allocation2 + $0x40] sm:$0xff]
      %v923 = vld [vmem:[#allocation2 + $0x48] sm:$0xff]
      %v924 = vld [vmem:[#allocation2 + $0x50] sm:$0xff]
      %v925 = vld [vmem:[#allocation2 + $0x58] sm:$0xff]
      %v926 = vld [vmem:[#allocation2 + $0x60] sm:$0xff]
      %v927 = vld [vmem:[#allocation2 + $0x68] sm:$0xff]
      %v928 = vld [vmem:[#allocation2 + $0x70] sm:$0xff]
      %v929 = vld [vmem:[#allocation2 + $0x78] sm:$0xff]
      %v930 = vpack.c.bf16 %v915, %v914
      %v931 = vpack.c.bf16 %v917, %v916
      %v932 = vpack.c.bf16 %v919, %v918
      %v933 = vpack.c.bf16 %v921, %v920
      %v934 = vpack.c.bf16 %v923, %v922
      %v935 = vpack.c.bf16 %v925, %v924
      %v936 = vpack.c.bf16 %v927, %v926
      %v937 = vpack.c.bf16 %v929, %v928
      %v938 = vld [vmem:[#allocation6] sm:$0xf]
      %v939 = vld [vmem:[#allocation6 + $0x4] sm:$0xf]
      %v940 = vld [vmem:[#allocation6 + $0x8] sm:$0xf]
      %v941 = vld [vmem:[#allocation6 + $0xc] sm:$0xf]
      %v942 = vld [vmem:[#allocation6 + $0x10] sm:$0xf]
      %v943 = vld [vmem:[#allocation6 + $0x14] sm:$0xf]
      %v944 = vld [vmem:[#allocation6 + $0x18] sm:$0xf]
      %v945 = vld [vmem:[#allocation6 + $0x1c] sm:$0xf]
      %v946 = vld [vmem:[#allocation6 + $0x20] sm:$0xf]
      %v947 = vld [vmem:[#allocation6 + $0x24] sm:$0xf]
      %v948 = vld [vmem:[#allocation6 + $0x28] sm:$0xf]
      %v949 = vld [vmem:[#allocation6 + $0x2c] sm:$0xf]
      %v950 = vld [vmem:[#allocation6 + $0x30] sm:$0xf]
      %v951 = vld [vmem:[#allocation6 + $0x34] sm:$0xf]
      %v952 = vld [vmem:[#allocation6 + $0x38] sm:$0xf]
      %v953 = vld [vmem:[#allocation6 + $0x3c] sm:$0xf]
      %v954 = vld [vmem:[%s8] sm:$0x1]
      %v956 = vlaneseq
      %v957 = vshrl.u32 %v956, 7
      %v958 = vsub.s32 0, %v957
      %v959 = vrot.slane %v954, %v958
      %v977 = vunpack.c.l.b16 %v938
      %v978 = vunpack.c.l.b16 %v939
      %v979 = vunpack.c.l.b16 %v940
      %v980 = vunpack.c.l.b16 %v941
      %v981 = vunpack.c.l.b16 %v942
      %v982 = vunpack.c.l.b16 %v943
      %v983 = vunpack.c.l.b16 %v944
      %v984 = vunpack.c.l.b16 %v945
      %v985 = vunpack.c.l.b16 %v946
      %v986 = vunpack.c.l.b16 %v947
      %v987 = vunpack.c.l.b16 %v948
      %v988 = vunpack.c.l.b16 %v949
      %v989 = vunpack.c.l.b16 %v950
      %v990 = vunpack.c.l.b16 %v951
      %v991 = vunpack.c.l.b16 %v952
      %v992 = vunpack.c.l.b16 %v953
      %v993 = vpack.c.b16 %v978, %v977
      %v994 = vpack.c.b16 %v980, %v979
      %v995 = vpack.c.b16 %v982, %v981
      %v996 = vpack.c.b16 %v984, %v983
      %v997 = vpack.c.b16 %v986, %v985
      %v998 = vpack.c.b16 %v988, %v987
      %v999 = vpack.c.b16 %v990, %v989
      %v1000 = vpack.c.b16 %v992, %v991
      %1009 = vmatprep.subr.bf16.mxu0 0
      %1010 = vmatpush1.bf16.msra.mxu0 %v993
      %1011 = vmatprep.subr.bf16.mxu0 0
      %1012 = vmatpush1.bf16.msra.mxu0 %v994
      %1013 = vmatprep.subr.bf16.mxu0 0
      %1014 = vmatpush1.bf16.msra.mxu0 %v995
      %1015 = vmatprep.subr.bf16.mxu0 0
      %1016 = vmatpush1.bf16.msra.mxu0 %v996
      %1017 = vmatprep.subr.bf16.mxu0 0
      %1018 = vmatpush1.bf16.msra.mxu0 %v997
      %1019 = vmatprep.subr.bf16.mxu0 0
      %1020 = vmatpush1.bf16.msra.mxu0 %v998
      %1021 = vmatprep.subr.bf16.mxu0 0
      %1022 = vmatpush1.bf16.msra.mxu0 %v999
      %1023 = vmatprep.subr.bf16.mxu0 0
      %1024 = vmatpush1.bf16.msra.mxu0 %v1000
      %1025 = vmatprep.subr.bf16.mxu0 0
      %1026 = vmatpush1.bf16.msra.mxu0 0
      %1027 = vmatprep.subr.bf16.mxu0 0
      %1028 = vmatpush1.bf16.msra.mxu0 0
      %1029 = vmatprep.subr.bf16.mxu0 0
      %1030 = vmatpush1.bf16.msra.mxu0 0
      %1031 = vmatprep.subr.bf16.mxu0 0
      %1032 = vmatpush1.bf16.msra.mxu0 0
      %1033 = vmatprep.subr.bf16.mxu0 0
      %1034 = vmatpush1.bf16.msra.mxu0 0
      %1035 = vmatprep.subr.bf16.mxu0 0
      %1036 = vmatpush1.bf16.msra.mxu0 0
      %1037 = vmatprep.subr.bf16.mxu0 0
      %1038 = vmatpush1.bf16.msra.mxu0 0
      %1039 = vmatprep.subr.bf16.mxu0 0
      %1040 = vmatpush1.bf16.msra.mxu0 0
      %1041 = vmatprep.mubr.bf16.mxu0 0
      %1042 = vmatmul.mubr.bf16.gmra.mrb[0].mxu0 %v930
      %v1043 = vpop.f32.mrb[0].mxu0
      %v1044 = vadd.f32 %v959, %v1043
      %v1045 = vpop.f32.mrb[0].mxu0
      %v1046 = vpop.f32.mrb[0].mxu0
      %v1047 = vadd.f32 %v959, %v1046
      %v1048 = vpop.f32.mrb[0].mxu0
      %1049 = vmatprep.mubr.bf16.mxu0 0
      %1050 = vmatmul.mubr.bf16.gmra.mrb[0].mxu0 %v931
      %v1051 = vpop.f32.mrb[0].mxu0
      %v1052 = vadd.f32 %v959, %v1051
      %v1053 = vpop.f32.mrb[0].mxu0
      %v1054 = vpop.f32.mrb[0].mxu0
      %v1055 = vadd.f32 %v959, %v1054
      %v1056 = vpop.f32.mrb[0].mxu0
      %1057 = vmatprep.mubr.bf16.mxu0 0
      %1058 = vmatmul.mubr.bf16.gmra.mrb[0].mxu0 %v932
      %v1059 = vpop.f32.mrb[0].mxu0
      %v1060 = vadd.f32 %v959, %v1059
      %v1061 = vpop.f32.mrb[0].mxu0
      %v1062 = vpop.f32.mrb[0].mxu0
      %v1063 = vadd.f32 %v959, %v1062
      %v1064 = vpop.f32.mrb[0].mxu0
      %1065 = vmatprep.mubr.bf16.mxu0 0
      %1066 = vmatmul.mubr.bf16.gmra.mrb[0].mxu0 %v933
      %v1067 = vpop.f32.mrb[0].mxu0
      %v1068 = vadd.f32 %v959, %v1067
      %v1069 = vpop.f32.mrb[0].mxu0
      %v1070 = vpop.f32.mrb[0].mxu0
      %v1071 = vadd.f32 %v959, %v1070
      %v1072 = vpop.f32.mrb[0].mxu0
      %1073 = vmatprep.mubr.bf16.mxu0 0
      %1074 = vmatmul.mubr.bf16.gmra.mrb[0].mxu0 %v934
      %v1075 = vpop.f32.mrb[0].mxu0
      %v1076 = vadd.f32 %v959, %v1075
      %v1077 = vpop.f32.mrb[0].mxu0
      %v1078 = vpop.f32.mrb[0].mxu0
      %v1079 = vadd.f32 %v959, %v1078
      %v1080 = vpop.f32.mrb[0].mxu0
      %1081 = vmatprep.mubr.bf16.mxu0 0
      %1082 = vmatmul.mubr.bf16.gmra.mrb[0].mxu0 %v935
      %v1083 = vpop.f32.mrb[0].mxu0
      %v1084 = vadd.f32 %v959, %v1083
      %v1085 = vpop.f32.mrb[0].mxu0
      %v1086 = vpop.f32.mrb[0].mxu0
      %v1087 = vadd.f32 %v959, %v1086
      %v1088 = vpop.f32.mrb[0].mxu0
      %1089 = vmatprep.mubr.bf16.mxu0 0
      %1090 = vmatmul.mubr.bf16.gmra.mrb[0].mxu0 %v936
      %v1091 = vpop.f32.mrb[0].mxu0
      %v1092 = vadd.f32 %v959, %v1091
      %v1093 = vpop.f32.mrb[0].mxu0
      %v1094 = vpop.f32.mrb[0].mxu0
      %v1095 = vadd.f32 %v959, %v1094
      %v1096 = vpop.f32.mrb[0].mxu0
      %1097 = vmatprep.mubr.bf16.mxu0 0
      %1098 = vmatmul.mubr.bf16.gmra.mrb[0].mxu0 %v937
      %v1099 = vpop.f32.mrb[0].mxu0
      %v1100 = vadd.f32 %v959, %v1099
      %v1101 = vpop.f32.mrb[0].mxu0
      %v1102 = vpop.f32.mrb[0].mxu0
      %v1103 = vadd.f32 %v959, %v1102
      %v1104 = vpop.f32.mrb[0].mxu0
      %1105 = vdwg.mxu0
      %v1106 = vmax.f32 %v1044, 0.0
      %v1107 = vmax.f32 %v1047, 0.0
      %v1108 = vmax.f32 %v1052, 0.0
      %v1109 = vmax.f32 %v1055, 0.0
      %v1110 = vmax.f32 %v1060, 0.0
      %v1111 = vmax.f32 %v1063, 0.0
      %v1112 = vmax.f32 %v1068, 0.0
      %v1113 = vmax.f32 %v1071, 0.0
      %v1114 = vmax.f32 %v1076, 0.0
      %v1115 = vmax.f32 %v1079, 0.0
      %v1116 = vmax.f32 %v1084, 0.0
      %v1117 = vmax.f32 %v1087, 0.0
      %v1118 = vmax.f32 %v1092, 0.0
      %v1119 = vmax.f32 %v1095, 0.0
      %v1120 = vmax.f32 %v1100, 0.0
      %v1121 = vmax.f32 %v1103, 0.0
      %1122 = vst [vmem:[#allocation12] sm:$0xff] %v1106
      %1123 = vst [vmem:[#allocation12 + $0x8] sm:$0xff] %v1107
      %1124 = vst [vmem:[#allocation12 + $0x10] sm:$0xff] %v1108
      %1125 = vst [vmem:[#allocation12 + $0x18] sm:$0xff] %v1109
      %1126 = vst [vmem:[#allocation12 + $0x20] sm:$0xff] %v1110
      %1127 = vst [vmem:[#allocation12 + $0x28] sm:$0xff] %v1111
      %1128 = vst [vmem:[#allocation12 + $0x30] sm:$0xff] %v1112
      %1129 = vst [vmem:[#allocation12 + $0x38] sm:$0xff] %v1113
      %1130 = vst [vmem:[#allocation12 + $0x40] sm:$0xff] %v1114
      %1131 = vst [vmem:[#allocation12 + $0x48] sm:$0xff] %v1115
      %1132 = vst [vmem:[#allocation12 + $0x50] sm:$0xff] %v1116
      %1133 = vst [vmem:[#allocation12 + $0x58] sm:$0xff] %v1117
      %1134 = vst [vmem:[#allocation12 + $0x60] sm:$0xff] %v1118
      %1135 = vst [vmem:[#allocation12 + $0x68] sm:$0xff] %v1119
      %1136 = vst [vmem:[#allocation12 + $0x70] sm:$0xff] %v1120
      %1137 = vst [vmem:[#allocation12 + $0x78] sm:$0xff] %v1121
      %v1138 = vld [vmem:[%s6] sm:$0x1]
      %v1139 = vlaneseq
      %v1140 = vshrl.u32 %v1139, 7
      %v1141 = vsub.s32 0, %v1140
      %v1142 = vrot.slane %v1138, %v1141
      %vm1143 = vcmp.eq.s32.totalorder %v1142, %v682
      %v1144 = vsel %vm1143, 1, 0
      %v1145 = vcvt.s32.f32 %v1144
      %1146 = vadd.xlane.f32.xlu0 %v1145
      %v1147 = vpop.xlane.xlu0 %1146
      %v1148 = vpack.c.bf16 %v1145, %v1145
      %v1149 = vpack.c.bf16 %v1107, %v1106
      %v1150 = vpack.c.bf16 %v1109, %v1108
      %v1151 = vpack.c.bf16 %v1111, %v1110
      %v1152 = vpack.c.bf16 %v1113, %v1112
      %v1153 = vpack.c.bf16 %v1115, %v1114
      %v1154 = vpack.c.bf16 %v1117, %v1116
      %v1155 = vpack.c.bf16 %v1119, %v1118
      %v1156 = vpack.c.bf16 %v1121, %v1120
      %1157 = vmatprep.subr.bf16.mxu0 0
      %1158 = vmatpush1.bf16.msra.mxu0 %v1149
      %1159 = vmatprep.subr.bf16.mxu0 0
      %1160 = vmatpush1.bf16.msra.mxu0 %v1150
      %1161 = vmatprep.subr.bf16.mxu0 0
      %1162 = vmatpush1.bf16.msra.mxu0 %v1151
      %1163 = vmatprep.subr.bf16.mxu0 0
      %1164 = vmatpush1.bf16.msra.mxu0 %v1152
      %1165 = vmatprep.subr.bf16.mxu0 0
      %1166 = vmatpush1.bf16.msra.mxu0 %v1153
      %1167 = vmatprep.subr.bf16.mxu0 0
      %1168 = vmatpush1.bf16.msra.mxu0 %v1154
      %1169 = vmatprep.subr.bf16.mxu0 0
      %1170 = vmatpush1.bf16.msra.mxu0 %v1155
      %1171 = vmatprep.subr.bf16.mxu0 0
      %1172 = vmatpush1.bf16.msra.mxu0 %v1156
      %1173 = vmatprep.subr.bf16.mxu0 0
      %1174 = vmatpush1.bf16.msra.mxu0 0
      %1175 = vmatprep.subr.bf16.mxu0 0
      %1176 = vmatpush1.bf16.msra.mxu0 0
      %1177 = vmatprep.subr.bf16.mxu0 0
      %1178 = vmatpush1.bf16.msra.mxu0 0
      %1179 = vmatprep.subr.bf16.mxu0 0
      %1180 = vmatpush1.bf16.msra.mxu0 0
      %1181 = vmatprep.subr.bf16.mxu0 0
      %1182 = vmatpush1.bf16.msra.mxu0 0
      %1183 = vmatprep.subr.bf16.mxu0 0
      %1184 = vmatpush1.bf16.msra.mxu0 0
      %1185 = vmatprep.subr.bf16.mxu0 0
      %1186 = vmatpush1.bf16.msra.mxu0 0
      %1187 = vmatprep.subr.bf16.mxu0 0
      %1188 = vmatpush1.bf16.msra.mxu0 0
      %1189 = vmatprep.mubr.bf16.mxu0 0
      %1190 = vmatmul.mubr.bf16.gmra.mrb[0].mxu0 %v1148
      %v1191 = vpop.f32.mrb[0].mxu0
      %v1192 = vadd.f32 0.0, %v1191
      %v1193 = vpop.f32.mrb[0].mxu0
      %v1194 = vpop.f32.mrb[0].mxu0
      %v1195 = vpop.f32.mrb[0].mxu0
      %1196 = vdwg.mxu0
      %v1197 = vmax.f32 %v1147, 1.0
      %v1198 = vrcp.pop %v1197
      %v1199 = vmul.f32 %v1192, %v1198
      %v1200 = vpack.c.bf16 %v1199, %v1199
      %v1201 = vld [vmem:[#allocation8] sm:$0xf]
      %v1202 = vld [vmem:[#allocation8 + $0x4] sm:$0xf]
      %v1203 = vld [vmem:[#allocation8 + $0x8] sm:$0xf]
      %v1204 = vld [vmem:[#allocation8 + $0xc] sm:$0xf]
      %v1205 = vld [vmem:[#allocation8 + $0x10] sm:$0xf]
      %v1206 = vld [vmem:[#allocation8 + $0x14] sm:$0xf]
      %v1207 = vld [vmem:[#allocation8 + $0x18] sm:$0xf]
      %v1208 = vld [vmem:[#allocation8 + $0x1c] sm:$0xf]
      %v1209 = vld [vmem:[#allocation8 + $0x20] sm:$0xf]
      %v1210 = vld [vmem:[#allocation8 + $0x24] sm:$0xf]
      %v1211 = vld [vmem:[#allocation8 + $0x28] sm:$0xf]
      %v1212 = vld [vmem:[#allocation8 + $0x2c] sm:$0xf]
      %v1213 = vld [vmem:[#allocation8 + $0x30] sm:$0xf]
      %v1214 = vld [vmem:[#allocation8 + $0x34] sm:$0xf]
      %v1215 = vld [vmem:[#allocation8 + $0x38] sm:$0xf]
      %v1216 = vld [vmem:[#allocation8 + $0x3c] sm:$0xf]
      %v1217 = vld [vmem:[%s10] sm:$0x1]
      %v1219 = vlaneseq
      %v1220 = vshrl.u32 %v1219, 7
      %v1221 = vsub.s32 0, %v1220
      %v1222 = vrot.slane %v1217, %v1221
      %v1240 = vunpack.c.l.b16 %v1201
      %v1241 = vunpack.c.l.b16 %v1202
      %v1242 = vunpack.c.l.b16 %v1203
      %v1243 = vunpack.c.l.b16 %v1204
      %v1244 = vunpack.c.l.b16 %v1205
      %v1245 = vunpack.c.l.b16 %v1206
      %v1246 = vunpack.c.l.b16 %v1207
      %v1247 = vunpack.c.l.b16 %v1208
      %v1248 = vunpack.c.l.b16 %v1209
      %v1249 = vunpack.c.l.b16 %v1210
      %v1250 = vunpack.c.l.b16 %v1211
      %v1251 = vunpack.c.l.b16 %v1212
      %v1252 = vunpack.c.l.b16 %v1213
      %v1253 = vunpack.c.l.b16 %v1214
      %v1254 = vunpack.c.l.b16 %v1215
      %v1255 = vunpack.c.l.b16 %v1216
      %v1256 = vpack.c.b16 %v1241, %v1240
      %v1257 = vpack.c.b16 %v1243, %v1242
      %v1258 = vpack.c.b16 %v1245, %v1244
      %v1259 = vpack.c.b16 %v1247, %v1246
      %v1260 = vpack.c.b16 %v1249, %v1248
      %v1261 = vpack.c.b16 %v1251, %v1250
      %v1262 = vpack.c.b16 %v1253, %v1252
      %v1263 = vpack.c.b16 %v1255, %v1254
      %1272 = vmatprep.subr.bf16.mxu0 0
      %1273 = vmatpush1.bf16.msra.mxu0 %v1256
      %1274 = vmatprep.subr.bf16.mxu0 0
      %1275 = vmatpush1.bf16.msra.mxu0 %v1257
      %1276 = vmatprep.subr.bf16.mxu0 0
      %1277 = vmatpush1.bf16.msra.mxu0 %v1258
      %1278 = vmatprep.subr.bf16.mxu0 0
      %1279 = vmatpush1.bf16.msra.mxu0 %v1259
      %1280 = vmatprep.subr.bf16.mxu0 0
      %1281 = vmatpush1.bf16.msra.mxu0 %v1260
      %1282 = vmatprep.subr.bf16.mxu0 0
      %1283 = vmatpush1.bf16.msra.mxu0 %v1261
      %1284 = vmatprep.subr.bf16.mxu0 0
      %1285 = vmatpush1.bf16.msra.mxu0 %v1262
      %1286 = vmatprep.subr.bf16.mxu0 0
      %1287 = vmatpush1.bf16.msra.mxu0 %v1263
      %1288 = vmatprep.subr.bf16.mxu0 0
      %1289 = vmatpush1.bf16.msra.mxu0 0
      %1290 = vmatprep.subr.bf16.mxu0 0
      %1291 = vmatpush1.bf16.msra.mxu0 0
      %1292 = vmatprep.subr.bf16.mxu0 0
      %1293 = vmatpush1.bf16.msra.mxu0 0
      %1294 = vmatprep.subr.bf16.mxu0 0
      %1295 = vmatpush1.bf16.msra.mxu0 0
      %1296 = vmatprep.subr.bf16.mxu0 0
      %1297 = vmatpush1.bf16.msra.mxu0 0
      %1298 = vmatprep.subr.bf16.mxu0 0
      %1299 = vmatpush1.bf16.msra.mxu0 0
      %1300 = vmatprep.subr.bf16.mxu0 0
      %1301 = vmatpush1.bf16.msra.mxu0 0
      %1302 = vmatprep.subr.bf16.mxu0 0
      %1303 = vmatpush1.bf16.msra.mxu0 0
      %1304 = vmatprep.mubr.bf16.mxu0 0
      %1305 = vmatmul.mubr.bf16.gmra.mrb[0].mxu0 %v1200
      %v1306 = vpop.f32.mrb[0].mxu0
      %v1307 = vadd.f32 %v1222, %v1306
      %v1308 = vpop.f32.mrb[0].mxu0
      %v1309 = vpop.f32.mrb[0].mxu0
      %v1310 = vpop.f32.mrb[0].mxu0
      %1311 = vdwg.mxu0
      %v1312 = vmax.f32 %v1307, 0.0
      %v1313 = vpack.c.bf16 %v1312, %v1312
      %v1314 = vld [vmem:[#allocation9] sm:$0xf]
      %v1315 = vld [vmem:[#allocation9 + $0x4] sm:$0xf]
      %v1316 = vld [vmem:[#allocation9 + $0x8] sm:$0xf]
      %v1317 = vld [vmem:[#allocation9 + $0xc] sm:$0xf]
      %v1318 = vld [vmem:[#allocation9 + $0x10] sm:$0xf]
      %v1319 = vld [vmem:[#allocation9 + $0x14] sm:$0xf]
      %v1320 = vld [vmem:[#allocation9 + $0x18] sm:$0xf]
      %v1321 = vld [vmem:[#allocation9 + $0x1c] sm:$0xf]
      %v1322 = vld [vmem:[#allocation9 + $0x20] sm:$0xf]
      %v1323 = vld [vmem:[#allocation9 + $0x24] sm:$0xf]
      %v1324 = vld [vmem:[#allocation9 + $0x28] sm:$0xf]
      %v1325 = vld [vmem:[#allocation9 + $0x2c] sm:$0xf]
      %v1326 = vld [vmem:[#allocation9 + $0x30] sm:$0xf]
      %v1327 = vld [vmem:[#allocation9 + $0x34] sm:$0xf]
      %v1328 = vld [vmem:[#allocation9 + $0x38] sm:$0xf]
      %v1329 = vld [vmem:[#allocation9 + $0x3c] sm:$0xf]
      %v1330 = vld [vmem:[%s12] sm:$0x1]
      %v1332 = vlaneseq
      %v1333 = vshrl.u32 %v1332, 7
      %v1334 = vsub.s32 0, %v1333
      %v1335 = vrot.slane %v1330, %v1334
      %v1353 = vunpack.c.l.b16 %v1314
      %v1354 = vunpack.c.l.b16 %v1315
      %v1355 = vunpack.c.l.b16 %v1316
      %v1356 = vunpack.c.l.b16 %v1317
      %v1357 = vunpack.c.l.b16 %v1318
      %v1358 = vunpack.c.l.b16 %v1319
      %v1359 = vunpack.c.l.b16 %v1320
      %v1360 = vunpack.c.l.b16 %v1321
      %v1361 = vunpack.c.l.b16 %v1322
      %v1362 = vunpack.c.l.b16 %v1323
      %v1363 = vunpack.c.l.b16 %v1324
      %v1364 = vunpack.c.l.b16 %v1325
      %v1365 = vunpack.c.l.b16 %v1326
      %v1366 = vunpack.c.l.b16 %v1327
      %v1367 = vunpack.c.l.b16 %v1328
      %v1368 = vunpack.c.l.b16 %v1329
      %v1369 = vpack.c.b16 %v1354, %v1353
      %v1370 = vpack.c.b16 %v1356, %v1355
      %v1371 = vpack.c.b16 %v1358, %v1357
      %v1372 = vpack.c.b16 %v1360, %v1359
      %v1373 = vpack.c.b16 %v1362, %v1361
      %v1374 = vpack.c.b16 %v1364, %v1363
      %v1375 = vpack.c.b16 %v1366, %v1365
      %v1376 = vpack.c.b16 %v1368, %v1367
      %1385 = vmatprep.subr.bf16.mxu0 0
      %1386 = vmatpush1.bf16.msra.mxu0 %v1369
      %1387 = vmatprep.subr.bf16.mxu0 0
      %1388 = vmatpush1.bf16.msra.mxu0 %v1370
      %1389 = vmatprep.subr.bf16.mxu0 0
      %1390 = vmatpush1.bf16.msra.mxu0 %v1371
      %1391 = vmatprep.subr.bf16.mxu0 0
      %1392 = vmatpush1.bf16.msra.mxu0 %v1372
      %1393 = vmatprep.subr.bf16.mxu0 0
      %1394 = vmatpush1.bf16.msra.mxu0 %v1373
      %1395 = vmatprep.subr.bf16.mxu0 0
      %1396 = vmatpush1.bf16.msra.mxu0 %v1374
      %1397 = vmatprep.subr.bf16.mxu0 0
      %1398 = vmatpush1.bf16.msra.mxu0 %v1375
      %1399 = vmatprep.subr.bf16.mxu0 0
      %1400 = vmatpush1.bf16.msra.mxu0 %v1376
      %1401 = vmatprep.subr.bf16.mxu0 0
      %1402 = vmatpush1.bf16.msra.mxu0 0
      %1403 = vmatprep.subr.bf16.mxu0 0
      %1404 = vmatpush1.bf16.msra.mxu0 0
      %1405 = vmatprep.subr.bf16.mxu0 0
      %1406 = vmatpush1.bf16.msra.mxu0 0
      %1407 = vmatprep.subr.bf16.mxu0 0
      %1408 = vmatpush1.bf16.msra.mxu0 0
      %1409 = vmatprep.subr.bf16.mxu0 0
      %1410 = vmatpush1.bf16.msra.mxu0 0
      %1411 = vmatprep.subr.bf16.mxu0 0
      %1412 = vmatpush1.bf16.msra.mxu0 0
      %1413 = vmatprep.subr.bf16.mxu0 0
      %1414 = vmatpush1.bf16.msra.mxu0 0
      %1415 = vmatprep.subr.bf16.mxu0 0
      %1416 = vmatpush1.bf16.msra.mxu0 0
      %1417 = vmatprep.mubr.bf16.mxu0 0
      %1418 = vmatmul.mubr.bf16.gmra.mrb[0].mxu0 %v1313
      %v1419 = vpop.f32.mrb[0].mxu0
      %v1420 = vadd.f32 %v1335, %v1419
      %v1421 = vpop.f32.mrb[0].mxu0
      %v1422 = vpop.f32.mrb[0].mxu0
      %v1423 = vpop.f32.mrb[0].mxu0
      %1424 = vdwg.mxu0
      %1425 = vst [vmem:[#allocation11] sm:$0xff] %v1420
    $region77: #{tpu_custom_call.1} parent=1 // pred_fallthru
      _
    // Predicated region
    $region78: #{tpu_custom_call.1} parent=1 // pred_check
      _
    $region79: #{tpu_custom_call.1} parent=1 // pred_check_branch
      %1427 = sbr.rel (0) target = $region81
    $region80: #{tpu_custom_call.1} parent=1 // pred_region
      %s1429 = ssub.s32 128, 128
      %1430 = vsyncadd [#allocation5], %s1429
      %s1432 = sshll.u32 [#allocation11], 4
      %s1433 = int_to_ptr.vmem [resolvable:$true] %s1432
      %1435 = dma.vmem_to_hbm [thread:$0]  %s1433, 128, %s13, [#allocation5]
    $region81: #{tpu_custom_call.1} parent=1 // pred_fallthru
      _
    // Predicated region
    $region82: #{tpu_custom_call.1} parent=1 // pred_check
      _
    $region83: #{tpu_custom_call.1} parent=1 // pred_check_branch
      %1437 = sbr.rel (0) target = $region85
    $region84: #{tpu_custom_call.1} parent=1 // pred_region
      %s1439 = ssub.s32 2048, 2048
      %1440 = vsyncadd [#allocation13], %s1439
      %s1441 = sshll.u32 [#allocation12], 4
      %s1442 = int_to_ptr.vmem [resolvable:$true] %s1441
      %1447 = dma.vmem_to_hbm [thread:$0]  %s1442, 2048, %s14, [#allocation13], 128, 128, 8
    $region85: #{tpu_custom_call.1} parent=1 // pred_fallthru
      _
    // Predicated region
    $region86: #{tpu_custom_call.1} parent=1 // pred_check
      _
    $region87: #{tpu_custom_call.1} parent=1 // pred_check_branch
      %1449 = sbr.rel (0) target = $region89
    $region88: #{tpu_custom_call.1} parent=1 // pred_region
      %1450 = dma.done [#allocation5], 128
    $region89: #{tpu_custom_call.1} parent=1 // pred_fallthru
      _
    // Predicated region
    $region90: #{tpu_custom_call.1} parent=1 // pred_check
      _
    $region91: #{tpu_custom_call.1} parent=1 // pred_check_branch
      %1452 = sbr.rel (0) target = $region93
    $region92: #{tpu_custom_call.1} parent=1 // pred_region
      %1453 = dma.done [#allocation13], 2048
    $region93: #{tpu_custom_call.1} parent=1 // pred_fallthru
      _
    %1454 = vsyncpa [#allocation4], 1
    %1455 = vsyncpa [#allocation7], 1
    %1456 = vsyncpa [#allocation10], 1
    %1457 = vsyncpa [#allocation5], 1
    %1458 = vsyncpa [#allocation13], 1

</llo_original>
